<compile_context>
chip_gen: v7x
topology: tpu7x:2x2x1
jax: 0.10.0
libtpu: 0.0.40
codegen_flags: <defaults>
</compile_context>

<pallas_src>
import functools

import jax
import jax.numpy as jnp
from jax.experimental import pallas as pl
from jax.experimental.pallas import tpu as pltpu


def _round_up(n, m):
    return ((n + m - 1) // m) * m


def _vmem_limit(nbytes):
    # Explicit scoped-VMEM request with headroom; capped at v7x's 64 MiB physical.
    return int(min(max(int(nbytes * 1.5) + (2 << 20), 8 << 20), 64 << 20))


# --------------------------------------------------------------------------- #
# Kernel 1: fused cam-encode stem + lift (stem matmul+ReLU -> split depthnet
# matmuls -> depth softmax -> depth x context outer product), row-tiled.
# --------------------------------------------------------------------------- #
def _camlift_kernel(x_ref, ws_ref, bs_ref, wdd_ref, bdd_ref, wdc_ref, bdc_ref,
                    o_ref, *, D, C):
    h = jnp.dot(x_ref[...], ws_ref[...], preferred_element_type=jnp.float32)
    h = jnp.maximum(h + bs_ref[...], 0.0)
    # depthnet weights are pre-split -> two small MXU dots instead of one dot
    # followed by a lane-unaligned slice at column D.
    dep = jnp.dot(h, wdd_ref[...], preferred_element_type=jnp.float32) + bdd_ref[...]
    ctx = jnp.dot(h, wdc_ref[...], preferred_element_type=jnp.float32) + bdc_ref[...]
    m = jnp.max(dep, axis=-1, keepdims=True)
    e = jnp.exp(dep - m)
    # approx reciprocal goes to the EUP slot (near-free); small deviation from an
    # exact divide, acceptable for inference.
    inv_s = pl.reciprocal(jnp.sum(e, axis=-1, keepdims=True), approx=True)
    depth = e * inv_s
    tm = depth.shape[0]
    # single broadcast outer product -> one lane-dense (tm, D*C) slab store
    out = (depth[:, :, None] * ctx[:, None, :]).reshape(tm, D * C)
    o_ref[...] = out.astype(o_ref.dtype)


def cam_lift(x, ws, bs, wd_dep, bd_dep, wd_ctx, bd_ctx, *, D, C, row_tile=512):
    """x: (M, Cin) f32 pixels.  Returns (M, D*C) bf16 lifted features, columns
    in (d, c) order (the kernel-natural layout consumed by the splat)."""
    M, K = x.shape
    hid = ws.shape[1]
    if K < 8:                                    # pad the 3-channel stem to 8 lanes
        x = jnp.pad(x, ((0, 0), (0, 8 - K)))
        ws = jnp.pad(ws, ((0, 8 - K), (0, 0)))
        K = 8
    tm = min(row_tile, _round_up(M, 16))
    Mp = _round_up(M, tm)                        # pad rows up to a tile multiple
    if Mp != M:
        x = jnp.pad(x, ((0, Mp - M), (0, 0)))
    vmem_need = (2 * tm * K * 4 + 2 * tm * D * C * 2
                 + tm * (hid + D + C + 2 * D * C) * 4
                 + (K * hid + hid * (D + C) + hid + D + C) * 4)
    out = pl.pallas_call(
        functools.partial(_camlift_kernel, D=D, C=C),
        out_shape=jax.ShapeDtypeStruct((Mp, D * C), jnp.bfloat16),
        grid=(Mp // tm,),
        in_specs=[
            pl.BlockSpec((tm, K), lambda i: (i, 0)),
            pl.BlockSpec((K, hid), lambda i: (0, 0)),
            pl.BlockSpec((1, hid), lambda i: (0, 0)),
            pl.BlockSpec((hid, D), lambda i: (0, 0)),
            pl.BlockSpec((1, D), lambda i: (0, 0)),
            pl.BlockSpec((hid, C), lambda i: (0, 0)),
            pl.BlockSpec((1, C), lambda i: (0, 0)),
        ],
        out_specs=pl.BlockSpec((tm, D * C), lambda i: (i, 0)),
        compiler_params=pltpu.CompilerParams(
            dimension_semantics=("parallel",),
            vmem_limit_bytes=_vmem_limit(vmem_need)),
    )(x, ws, bs.reshape(1, hid), wd_dep, bd_dep.reshape(1, D),
      wd_ctx, bd_ctx.reshape(1, C))
    return out[:M]


# --------------------------------------------------------------------------- #
# Kernel 2: "splat" voxel pooling + fused z-max + fused BEV 1x1-conv head.
# scatter-add (torch index_put_ accumulate=True) expressed as a one-hot
# segment-sum matmul on the MXU; the one-hot tile is built on-chip from int32
# voxel ids; the full (Vp, C) accumulator lives in VMEM so the lifted features
# are streamed once per (b, z); (v-chunk, p-tile) pairs with no hits are
# skipped via scalar-prefetched per-tile voxel-id [min, max].
# --------------------------------------------------------------------------- #
def _splat_bev_kernel(tmin_ref, tmax_ref,
                      flat_ref, feat_ref, w1_ref, b1_ref, w2_ref, b2_ref,
                      o_ref, acc_ref, zmax_ref,
                      *, tv, nxy, n_vchunks):
    b = pl.program_id(0)
    z = pl.program_id(1)
    p = pl.program_id(2)
    last_z = pl.num_programs(1) - 1
    last_p = pl.num_programs(2) - 1

    @pl.when(p == 0)
    def _():
        acc_ref[...] = jnp.zeros_like(acc_ref)

    tmin = tmin_ref[b, p]
    tmax = tmax_ref[b, p]
    zbase = z * nxy

    # Skip the whole p-tile if none of its voxel ids fall in this z-slab.
    # Accumulator init / finalize above & below stay unconditional.
    @pl.when((tmax >= zbase) & (tmin < zbase + nxy))
    def _():
        rel = flat_ref[...] - zbase                          # (1, tp) int32
        feat = feat_ref[...]                                 # (tp, C) bf16
        iota_v = jax.lax.broadcasted_iota(jnp.int32, (tv, rel.shape[1]), 0)

        def vbody(vi, carry):
            lo = vi * tv

            # per-v-chunk skip: camera-frustum locality makes most chunks empty.
            @pl.when((tmax >= zbase + lo) & (tmin < zbase + lo + tv))
            def _():
                # rows xy >= nxy are padded BEV rows and get sliced off outside,
                # so no explicit (xy < nxy) mask is needed.
                onehot = ((rel - lo) == iota_v).astype(feat.dtype)   # (tv, tp)
                psum = jnp.dot(onehot, feat,
                               preferred_element_type=jnp.float32)   # (tv, C)
                r0 = pl.multiple_of(lo, tv)
                acc_ref[pl.ds(r0, tv), :] = acc_ref[pl.ds(r0, tv), :] + psum
            return carry

        jax.lax.fori_loop(0, n_vchunks, vbody, 0)

    @pl.when(p == last_p)
    def _():
        @pl.when(z == 0)
        def _():
            zmax_ref[...] = acc_ref[...]

        @pl.when(z > 0)
        def _():
            zmax_ref[...] = jnp.maximum(zmax_ref[...], acc_ref[...])

        @pl.when(z == last_z)
        def _():
            # fused BEV head (1x1 conv + ReLU -> 1x1 conv + bias) applied to the
            # z-maxed volume: the (B, nxy, C) BEV tensor never touches HBM.
            h = jnp.dot(zmax_ref[...], w1_ref[...],
                        preferred_element_type=jnp.float32) + b1_ref[...]
            h = jnp.maximum(h, 0.0)
            y = jnp.dot(h, w2_ref[...],
                        preferred_element_type=jnp.float32) + b2_ref[...]
            o_ref[...] = y.astype(o_ref.dtype)


def splat_bev(flat, feats, w1, b1, w2, b2, *, nxy, nz, outC):
    """flat: (B, P) int32 voxel ids in [0, nz*nxy) (== nz*nxy means invalid);
    feats: (B, P, C) bf16.  Returns (B, nxy, outC) f32 = BEV head applied to the
    max over z of per-voxel feature sums."""
    B, P = flat.shape
    C = feats.shape[-1]
    hid = w1.shape[1]

    tp = min(2048, _round_up(P, 128))
    Pp = _round_up(P, tp)
    tv = min(512, _round_up(nxy, 8))
    Vp = _round_up(nxy, tv)
    n_pt = Pp // tp
    n_vchunks = Vp // tv

    if Pp != P:
        flat = jnp.pad(flat, ((0, 0), (0, Pp - P)), constant_values=nz * nxy)
        feats = jnp.pad(feats, ((0, 0), (0, Pp - P), (0, 0)))

    # per-(b, p-tile) voxel-id [min, max] over VALID points only -> scalar
    # prefetch for in-kernel tile skipping (all-invalid tiles skip entirely).
    ftile = flat.reshape(B, n_pt, tp)
    vmask = ftile < nz * nxy
    tmin = jnp.min(jnp.where(vmask, ftile, jnp.int32(2 ** 30)), axis=-1).astype(jnp.int32)
    tmax = jnp.max(jnp.where(vmask, ftile, jnp.int32(-1)), axis=-1).astype(jnp.int32)

    flat3 = flat.reshape(B, 1, Pp)

    vmem_need = (2 * Vp * C * 4 + Vp * hid * 4 + 2 * Vp * outC * 4
                 + 2 * (tp * C * 2 + tp * 4)
                 + 2 * (tv * tp * 2 + tv * C * 4)
                 + (C * hid + hid + hid * outC + outC) * 4)

    grid_spec = pltpu.PrefetchScalarGridSpec(
        num_scalar_prefetch=2,
        grid=(B, nz, n_pt),
        in_specs=[
            pl.BlockSpec((None, 1, tp), lambda b, z, p, *_: (b, 0, p)),
            pl.BlockSpec((None, tp, C), lambda b, z, p, *_: (b, p, 0)),
            pl.BlockSpec((C, hid), lambda b, z, p, *_: (0, 0)),
            pl.BlockSpec((1, hid), lambda b, z, p, *_: (0, 0)),
            pl.BlockSpec((hid, outC), lambda b, z, p, *_: (0, 0)),
            pl.BlockSpec((1, outC), lambda b, z, p, *_: (0, 0)),
        ],
        out_specs=pl.BlockSpec((None, Vp, outC), lambda b, z, p, *_: (b, 0, 0)),
        scratch_shapes=[pltpu.VMEM((Vp, C), jnp.float32),   # per-z sum accumulator
                        pltpu.VMEM((Vp, C), jnp.float32)],  # running z-max
    )
    # NOTE(v7x): only B is a "parallel" axis here; B should be >= 2 (ideally even)
    # so both TensorCores get balanced shards of the dominant kernel.
    out = pl.pallas_call(
        functools.partial(_splat_bev_kernel, tv=tv, nxy=nxy, n_vchunks=n_vchunks),
        out_shape=jax.ShapeDtypeStruct((B, Vp, outC), jnp.float32),
        grid_spec=grid_spec,
        compiler_params=pltpu.CompilerParams(
            dimension_semantics=("parallel", "arbitrary", "arbitrary"),
            vmem_limit_bytes=_vmem_limit(vmem_need)),
        cost_estimate=pl.CostEstimate(
            flops=2 * B * nz * Vp * Pp * C + 2 * B * Vp * (C * hid + hid * outC),
            transcendentals=0,
            bytes_accessed=B * nz * Pp * (4 + 2 * C) + B * Vp * outC * 4),
    )(tmin, tmax, flat3, feats, w1, b1.reshape(1, hid), w2, b2.reshape(1, outC))
    return out[:, :nxy, :]


# --------------------------------------------------------------------------- #
# JAX glue: config, frustum, geometry, voxel bookkeeping
# --------------------------------------------------------------------------- #
def gen_dx_bx(xbound, ybound, zbound):
    dx = jnp.array([row[2] for row in (xbound, ybound, zbound)], jnp.float32)
    bx = jnp.array([row[0] + row[2] / 2.0 for row in (xbound, ybound, zbound)],
                   jnp.float32)
    nx = [int((row[1] - row[0]) / row[2]) for row in (xbound, ybound, zbound)]
    return dx, bx, nx


def create_frustum(grid_conf, final_dim, fH, fW):
    ogfH, ogfW = final_dim
    d = jnp.arange(*grid_conf['dbound'], dtype=jnp.float32)
    D = d.shape[0]
    ds = jnp.broadcast_to(d[:, None, None], (D, fH, fW))
    xs = jnp.broadcast_to(
        jnp.linspace(0.0, ogfW - 1.0, fW, dtype=jnp.float32)[None, None, :],
        (D, fH, fW))
    ys = jnp.broadcast_to(
        jnp.linspace(0.0, ogfH - 1.0, fH, dtype=jnp.float32)[None, :, None],
        (D, fH, fW))
    ones = jnp.ones_like(ds)
    return jnp.stack([xs, ys, ds, ones], axis=-1)  # (D, fH, fW, 4)


def get_geometry(frustum, rots, trans, intrins, post_rots, post_trans):
    # Tiny 4x4 transforms; kept in plain JAX (glue), not the hot path.
    B, N = intrins.shape[:2]
    D, H, W, _ = frustum.shape
    eye = jnp.broadcast_to(jnp.eye(4, dtype=jnp.float32), (B, N, 4, 4))

    sensor2ego = eye.at[:, :, :3, :3].set(rots).at[:, :, :3, 3].set(trans)
    intrin_m = eye.at[:, :, :3, :3].set(intrins)
    ida_m = eye.at[:, :, :3, :3].set(post_rots).at[:, :, :3, 3].set(post_trans)

    pts = frustum.reshape(1, 1, D, H, W, 4, 1)
    pts = jnp.linalg.inv(ida_m).reshape(B, N, 1, 1, 1, 4, 4) @ pts
    pts = jnp.concatenate(
        [pts[..., :2, :] * pts[..., 2:3, :], pts[..., 2:, :]], axis=-2)
    combine = sensor2ego @ jnp.linalg.inv(intrin_m)
    pts = combine.reshape(B, N, 1, 1, 1, 4, 4) @ pts
    return pts[..., :3, 0]  # (B, N, D, H, W, 3)


def voxel_pooling_bev(geom, weighted, grid_conf, nx, w1, b1, w2, b2, outC):
    """geom: (B, N, D, H, W, 3);  weighted: (B*N*H*W, D*C) bf16 in (b, n, h, w)
    row order with (d, c) columns (cam_lift's natural layout)."""
    B, N, D, H, W, _ = geom.shape
    C = weighted.shape[1] // D
    nx0, nx1, nz = nx
    nxy = nx0 * nx1
    xb, yb, zb = grid_conf['xbound'], grid_conf['ybound'], grid_conf['zbound']
    vsize = jnp.array([(xb[1] - xb[0]) / nx0,
                       (yb[1] - yb[0]) / nx1,
                       (zb[1] - zb[0]) / nz], jnp.float32)
    vcoord = jnp.array([xb[0], yb[0], zb[0]], jnp.float32)

    # torch .long() truncates toward zero; int32 astype matches that.
    gi = ((geom - (vcoord - vsize / 2.0)) / vsize).astype(jnp.int32)
    valid = ((gi[..., 0] >= 0) & (gi[..., 0] < nx0) &
             (gi[..., 1] >= 0) & (gi[..., 1] < nx1) &
             (gi[..., 2] >= 0) & (gi[..., 2] < nz))

    # flat voxel id ordering matches the reference out[(b, z, x, y), c] layout
    flat = gi[..., 2] * nxy + gi[..., 0] * nx1 + gi[..., 1]
    flat = jnp.where(valid, flat, nz * nxy)   # sentinel: never accumulated

    # Reorder only the SMALL int32 index tensor to the kernel's natural
    # (n, h, w, d) feature order; the big feature activation is never transposed.
    flat = jnp.transpose(flat, (0, 1, 3, 4, 2)).reshape(B, N * H * W * D)
    feats = weighted.reshape(B, N * H * W * D, C)        # pure reshape, no copy

    bev = splat_bev(flat, feats, w1, b1, w2, b2, nxy=nxy, nz=nz, outC=outC)
    return bev.reshape(B, nx0, nx1, outC)


# --------------------------------------------------------------------------- #
# Model
# --------------------------------------------------------------------------- #
class LiftSplatShootPallas:
    def __init__(self, grid_conf, data_aug_conf, outC, key):
        self.grid_conf = grid_conf
        self.data_aug_conf = data_aug_conf
        self.outC = outC
        self.downsample = 16
        self.camC = 16
        self.dx, self.bx, self.nx = gen_dx_bx(grid_conf['xbound'],
                                              grid_conf['ybound'],
                                              grid_conf['zbound'])
        db = grid_conf['dbound']
        self.D = int((db[1] - db[0]) / db[2])
        hid = 32
        self.hid = hid

        # TODO(synk): EfficientNet-b0 trunk + Up block of CamEncode replaced by
        # avg-pool downsample + 1x1 conv stem; resnet18-based BevEncode (7x7
        # conv, residual layers, BatchNorm, bilinear Up) replaced by a fused
        # 1x1-conv BEV head.  Weights below are deterministic synthetic init.
        k = jax.random.split(key, 8)
        s = 0.1
        self.params = dict(
            w_stem=s * jax.random.normal(k[0], (3, hid), jnp.float32),
            b_stem=s * jax.random.normal(k[1], (hid,), jnp.float32),
            w_dn=s * jax.random.normal(k[2], (hid, self.D + self.camC), jnp.float32),
            b_dn=s * jax.random.normal(k[3], (self.D + self.camC,), jnp.float32),
            w_bev1=s * jax.random.normal(k[4], (self.camC, hid), jnp.float32),
            b_bev1=s * jax.random.normal(k[5], (hid,), jnp.float32),
            w_bev2=s * jax.random.normal(k[6], (hid, outC), jnp.float32),
            b_bev2=s * jax.random.normal(k[7], (outC,), jnp.float32),
        )

    def forward(self, x, rots, trans, intrins, post_rots, post_trans):
        B, N, Cin, imH, imW = x.shape
        ds = self.downsample
        fH, fW = imH // ds, imW // ds
        D, C = self.D, self.camC

        # --- cam encode + lift (fused Pallas kernel, bf16 output) ---
        xp = x.reshape(B * N, Cin, fH, ds, fW, ds).mean(axis=(3, 5))  # (BN,Cin,fH,fW)
        xp = jnp.transpose(xp, (0, 2, 3, 1)).reshape(B * N * fH * fW, Cin)
        wd, bd = self.params['w_dn'], self.params['b_dn']
        weighted = cam_lift(xp, self.params['w_stem'], self.params['b_stem'],
                            wd[:, :D], bd[:D], wd[:, D:], bd[D:], D=D, C=C)
        # weighted: (B*N*fH*fW, D*C) bf16 — kept in kernel-natural order

        # --- geometry (glue) ---
        frustum = create_frustum(self.grid_conf,
                                 self.data_aug_conf['final_dim'], fH, fW)
        geom = get_geometry(frustum, rots, trans, intrins, post_rots, post_trans)

        # --- splat (voxel pooling) + fused z-max + fused BEV head (one kernel) ---
        bev = voxel_pooling_bev(geom, weighted, self.grid_conf, self.nx,
                                self.params['w_bev1'], self.params['b_bev1'],
                                self.params['w_bev2'], self.params['b_bev2'],
                                self.outC)                       # (B,nx0,nx1,outC)
        return jnp.transpose(bev, (0, 3, 1, 2))  # (B, outC, nx0, nx1) like NCHW


# --------------------------------------------------------------------------- #
if __name__ == "__main__":
    key = jax.random.PRNGKey(0)
    grid_conf = {
        'xbound': [-40.0, 40.0, 5.0],   # nx0 = 16
        'ybound': [-40.0, 40.0, 5.0],   # nx1 = 16
        'zbound': [-10.0, 10.0, 10.0],  # nz  = 2
        'dbound': [4.0, 44.0, 10.0],    # D   = 4
    }
    B, N, imH, imW = 2, 2, 64, 64
    data_aug_conf = {'final_dim': (imH, imW)}
    outC = 4

    kmodel, kx, ktrans = jax.random.split(key, 3)
    model = LiftSplatShootPallas(grid_conf, data_aug_conf, outC, kmodel)

    x = jax.random.normal(kx, (B, N, 3, imH, imW), jnp.float32)
    rots = jnp.broadcast_to(jnp.eye(3, dtype=jnp.float32), (B, N, 3, 3))
    trans = 0.5 * jax.random.normal(ktrans, (B, N, 3), jnp.float32)
    f, cx, cy = 32.0, 32.0, 32.0
    intrins = jnp.broadcast_to(
        jnp.array([[f, 0.0, cx], [0.0, f, cy], [0.0, 0.0, 1.0]], jnp.float32),
        (B, N, 3, 3))
    post_rots = jnp.broadcast_to(jnp.eye(3, dtype=jnp.float32), (B, N, 3, 3))
    post_trans = jnp.zeros((B, N, 3), jnp.float32)

    out = model.forward(x, rots, trans, intrins, post_rots, post_trans)
    out = jax.block_until_ready(out)
    assert out.shape == (B, outC, model.nx[0], model.nx[1])
    print("KERNEL_OK")
</pallas_src>

<mosaic_0001>
module attributes {stable_mosaic.version = 11 : i64} {
  func.func @_camlift_kernel(%arg0: i32, %arg1: memref<64x8xf32, #tpu.memory_space<vmem>>, %arg2: memref<8x32xf32, #tpu.memory_space<vmem>>, %arg3: memref<1x32xf32, #tpu.memory_space<vmem>>, %arg4: memref<32x4xf32, #tpu.memory_space<vmem>>, %arg5: memref<1x4xf32, #tpu.memory_space<vmem>>, %arg6: memref<32x16xf32, #tpu.memory_space<vmem>>, %arg7: memref<1x16xf32, #tpu.memory_space<vmem>>, %arg8: memref<64x64xbf16, #tpu.memory_space<vmem>>) attributes {dimension_semantics = [#tpu.dimension_semantics<parallel>], iteration_bounds = array<i64: 1>, scalar_prefetch = 0 : i64, scratch_operands = 0 : i64, tpu.core_type = #tpu.core_type<tc>, window_params = [{transform_indices = @transform_0, window_bounds = array<i64: 64, 8>}, {pipeline_mode = #tpu.pipeline_mode<synchronous>, transform_indices = @transform_1, window_bounds = array<i64: 8, 32>}, {pipeline_mode = #tpu.pipeline_mode<synchronous>, transform_indices = @transform_2, window_bounds = array<i64: 1, 32>}, {pipeline_mode = #tpu.pipeline_mode<synchronous>, transform_indices = @transform_3, window_bounds = array<i64: 32, 4>}, {pipeline_mode = #tpu.pipeline_mode<synchronous>, transform_indices = @transform_4, window_bounds = array<i64: 1, 4>}, {pipeline_mode = #tpu.pipeline_mode<synchronous>, transform_indices = @transform_5, window_bounds = array<i64: 32, 16>}, {pipeline_mode = #tpu.pipeline_mode<synchronous>, transform_indices = @transform_6, window_bounds = array<i64: 1, 16>}, {transform_indices = @transform_7, window_bounds = array<i64: 64, 64>}]} {
    %c0 = arith.constant 0 : index
    %c0_0 = arith.constant 0 : index
    %0 = vector.load %arg1[%c0, %c0_0] : memref<64x8xf32, #tpu.memory_space<vmem>>, vector<64x8xf32>
    %c0_1 = arith.constant 0 : index
    %c0_2 = arith.constant 0 : index
    %1 = vector.load %arg2[%c0_1, %c0_2] : memref<8x32xf32, #tpu.memory_space<vmem>>, vector<8x32xf32>
    %cst = arith.constant dense<0.000000e+00> : vector<64x32xf32>
    %2 = tpu.matmul %0, %1, %cst {dimension_numbers = #tpu.dot_dimension_numbers<[1], [0], [0], [1], [0, 0, 1, 1], [], []>} : vector<64x8xf32>, vector<8x32xf32>, vector<64x32xf32> -> vector<64x32xf32>
    %c0_3 = arith.constant 0 : index
    %c0_4 = arith.constant 0 : index
    %3 = vector.load %arg3[%c0_3, %c0_4] : memref<1x32xf32, #tpu.memory_space<vmem>>, vector<1x32xf32>
    %4 = vector.broadcast %3 : vector<1x32xf32> to vector<64x32xf32>
    %5 = arith.addf %2, %4 : vector<64x32xf32>
    %cst_5 = arith.constant 0.000000e+00 : f32
    %6 = vector.broadcast %cst_5 : f32 to vector<64x32xf32>
    %7 = arith.maximumf %5, %6 : vector<64x32xf32>
    %c0_6 = arith.constant 0 : index
    %c0_7 = arith.constant 0 : index
    %8 = vector.load %arg4[%c0_6, %c0_7] : memref<32x4xf32, #tpu.memory_space<vmem>>, vector<32x4xf32>
    %cst_8 = arith.constant dense<0.000000e+00> : vector<64x4xf32>
    %9 = tpu.matmul %7, %8, %cst_8 {dimension_numbers = #tpu.dot_dimension_numbers<[1], [0], [0], [1], [0, 0, 1, 1], [], []>} : vector<64x32xf32>, vector<32x4xf32>, vector<64x4xf32> -> vector<64x4xf32>
    %c0_9 = arith.constant 0 : index
    %c0_10 = arith.constant 0 : index
    %10 = vector.load %arg5[%c0_9, %c0_10] : memref<1x4xf32, #tpu.memory_space<vmem>>, vector<1x4xf32>
    %11 = vector.broadcast %10 : vector<1x4xf32> to vector<64x4xf32>
    %12 = arith.addf %9, %11 : vector<64x4xf32>
    %c0_11 = arith.constant 0 : index
    %c0_12 = arith.constant 0 : index
    %13 = vector.load %arg6[%c0_11, %c0_12] : memref<32x16xf32, #tpu.memory_space<vmem>>, vector<32x16xf32>
    %cst_13 = arith.constant dense<0.000000e+00> : vector<64x16xf32>
    %14 = tpu.matmul %7, %13, %cst_13 {dimension_numbers = #tpu.dot_dimension_numbers<[1], [0], [0], [1], [0, 0, 1, 1], [], []>} : vector<64x32xf32>, vector<32x16xf32>, vector<64x16xf32> -> vector<64x16xf32>
    %c0_14 = arith.constant 0 : index
    %c0_15 = arith.constant 0 : index
    %15 = vector.load %arg7[%c0_14, %c0_15] : memref<1x16xf32, #tpu.memory_space<vmem>>, vector<1x16xf32>
    %16 = vector.broadcast %15 : vector<1x16xf32> to vector<64x16xf32>
    %17 = arith.addf %14, %16 : vector<64x16xf32>
    %cst_16 = arith.constant dense<0xFF800000> : vector<64xf32>
    %18 = vector.multi_reduction <maximumf>, %12, %cst_16 [1] : vector<64x4xf32> to vector<64xf32>
    %19 = vector.shape_cast %18 : vector<64xf32> to vector<64x1xf32>
    %20 = vector.broadcast %19 : vector<64x1xf32> to vector<64x4xf32>
    %21 = arith.subf %12, %20 : vector<64x4xf32>
    %22 = math.exp %21 : vector<64x4xf32>
    %cst_17 = arith.constant dense<0.000000e+00> : vector<64xf32>
    %23 = vector.multi_reduction <add>, %22, %cst_17 [1] : vector<64x4xf32> to vector<64xf32>
    %24 = vector.shape_cast %23 : vector<64xf32> to vector<64x1xf32>
    %25 = tpu.reciprocal %24 {approx = true} : vector<64x1xf32> -> vector<64x1xf32>
    %26 = vector.broadcast %25 : vector<64x1xf32> to vector<64x4xf32>
    %27 = arith.mulf %22, %26 : vector<64x4xf32>
    %28 = vector.shape_cast %27 : vector<64x4xf32> to vector<64x4x1xf32>
    %29 = vector.shape_cast %17 : vector<64x16xf32> to vector<64x1x16xf32>
    %30 = vector.broadcast %28 : vector<64x4x1xf32> to vector<64x4x16xf32>
    %31 = vector.broadcast %29 : vector<64x1x16xf32> to vector<64x4x16xf32>
    %32 = arith.mulf %30, %31 : vector<64x4x16xf32>
    %33 = vector.shape_cast %32 : vector<64x4x16xf32> to vector<64x64xf32>
    %34 = arith.truncf %33 : vector<64x64xf32> to vector<64x64xbf16>
    %c0_18 = arith.constant 0 : index
    %c0_19 = arith.constant 0 : index
    %35 = vector.load %arg8[%c0_18, %c0_19] : memref<64x64xbf16, #tpu.memory_space<vmem>>, vector<64x64xbf16>
    tpu.vector_store %arg8[%c0_18, %c0_19], %34 {strides = array<i32>} : memref<64x64xbf16, #tpu.memory_space<vmem>>, vector<64x64xbf16>,
    return
  }
  func.func @transform_0(%arg0: i32) -> (i32, i32) {
    %c0_i32 = arith.constant 0 : i32
    %c0_i32_0 = arith.constant 0 : i32
    return %arg0, %c0_i32 : i32, i32
  }
  func.func @transform_1(%arg0: i32) -> (i32, i32) {
    %c0_i32 = arith.constant 0 : i32
    %c0_i32_0 = arith.constant 0 : i32
    %c0_i32_1 = arith.constant 0 : i32
    return %c0_i32, %c0_i32_0 : i32, i32
  }
  func.func @transform_2(%arg0: i32) -> (i32, i32) {
    %c0_i32 = arith.constant 0 : i32
    %c0_i32_0 = arith.constant 0 : i32
    %c0_i32_1 = arith.constant 0 : i32
    return %c0_i32, %c0_i32_0 : i32, i32
  }
  func.func @transform_3(%arg0: i32) -> (i32, i32) {
    %c0_i32 = arith.constant 0 : i32
    %c0_i32_0 = arith.constant 0 : i32
    %c0_i32_1 = arith.constant 0 : i32
    return %c0_i32, %c0_i32_0 : i32, i32
  }
  func.func @transform_4(%arg0: i32) -> (i32, i32) {
    %c0_i32 = arith.constant 0 : i32
    %c0_i32_0 = arith.constant 0 : i32
    %c0_i32_1 = arith.constant 0 : i32
    return %c0_i32, %c0_i32_0 : i32, i32
  }
  func.func @transform_5(%arg0: i32) -> (i32, i32) {
    %c0_i32 = arith.constant 0 : i32
    %c0_i32_0 = arith.constant 0 : i32
    %c0_i32_1 = arith.constant 0 : i32
    return %c0_i32, %c0_i32_0 : i32, i32
  }
  func.func @transform_6(%arg0: i32) -> (i32, i32) {
    %c0_i32 = arith.constant 0 : i32
    %c0_i32_0 = arith.constant 0 : i32
    %c0_i32_1 = arith.constant 0 : i32
    return %c0_i32, %c0_i32_0 : i32, i32
  }
  func.func @transform_7(%arg0: i32) -> (i32, i32) {
    %c0_i32 = arith.constant 0 : i32
    %c0_i32_0 = arith.constant 0 : i32
    return %arg0, %c0_i32 : i32, i32
  }
}

</mosaic_0001>

<llo_original>
// kernel: tpu_custom_call.1
$region0: #{tpu_custom_call.1}
  #allocation0 [shape = 'u32[]', space=smem, size = 0x4, offset = 0x4, fixed_abs, tag = 'smem constant byte address 0x4 - core index']
  #allocation1 [shape = 'u32[144,128]{1,0:T(1,128)}', space=vmem, size = 0x12000, scoped, tag = 'internal scratch']
  %s0 = inlined_call_operand.vmem [shape: f32[64,8], index: 0, kind: input, shape index: {}]
  %s1 = inlined_call_operand.vmem [shape: f32[8,32], index: 1, kind: input, shape index: {}]
  %s2 = inlined_call_operand.vmem [shape: f32[1,32], index: 2, kind: input, shape index: {}]
  %s3 = inlined_call_operand.vmem [shape: f32[32,4], index: 3, kind: input, shape index: {}]
  %s4 = inlined_call_operand.vmem [shape: f32[1,4], index: 4, kind: input, shape index: {}]
  %s5 = inlined_call_operand.vmem [shape: f32[32,16], index: 5, kind: input, shape index: {}]
  %s6 = inlined_call_operand.vmem [shape: f32[1,16], index: 6, kind: input, shape index: {}]
  %s7 = inlined_call_operand.hbm [shape: bf16[64,64], index: 7, kind: output, shape index: {}]
  %s8 = sld [smem:[#allocation0]]
  $region38: #{tpu_custom_call.1} parent=0
    _
  %s10 = ssub.s32 1, %s8
  %s11 = scalar_select 0, %s10, %s8
  $region1: #{tpu_custom_call.1} parent=0
    #allocation2 [shape = 'u8[16384]{0}', space=vmem, size = 0x4000, scoped, tag = 'output window, operand 0, single buffered']
    #allocation3 [shape = 's32[1]{0}', space=sflag, size = 0x4, scoped, tag = 'scoped memory for tpu_custom_call.1']
    %12 = vsyncpa [#allocation3], 0
    // Predicated region
    $region2: #{tpu_custom_call.1} parent=1 // pred_check
      _
    $region3: #{tpu_custom_call.1} parent=1 // pred_check_branch
      %14 = sbr.rel (0) target = $region5
    $region4: #{tpu_custom_call.1} parent=1 // pred_region
      _
    $region5: #{tpu_custom_call.1} parent=1 // pred_fallthru
      _
    // Predicated region
    $region6: #{tpu_custom_call.1} parent=1 // pred_check
      _
    $region7: #{tpu_custom_call.1} parent=1 // pred_check_branch
      %16 = sbr.rel (0) target = $region9
    $region8: #{tpu_custom_call.1} parent=1 // pred_region
      _
    $region9: #{tpu_custom_call.1} parent=1 // pred_fallthru
      _
    // Predicated region
    $region10: #{tpu_custom_call.1} parent=1 // pred_check
      _
    $region11: #{tpu_custom_call.1} parent=1 // pred_check_branch
      %18 = sbr.rel (0) target = $region13
    $region12: #{tpu_custom_call.1} parent=1 // pred_region
      _
    $region13: #{tpu_custom_call.1} parent=1 // pred_fallthru
      _
    // Predicated region
    $region14: #{tpu_custom_call.1} parent=1 // pred_check
      _
    $region15: #{tpu_custom_call.1} parent=1 // pred_check_branch
      %20 = sbr.rel (0) target = $region17
    $region16: #{tpu_custom_call.1} parent=1 // pred_region
      _
    $region17: #{tpu_custom_call.1} parent=1 // pred_fallthru
      _
    // Predicated region
    $region18: #{tpu_custom_call.1} parent=1 // pred_check
      _
    $region19: #{tpu_custom_call.1} parent=1 // pred_check_branch
      %22 = sbr.rel (0) target = $region21
    $region20: #{tpu_custom_call.1} parent=1 // pred_region
      _
    $region21: #{tpu_custom_call.1} parent=1 // pred_fallthru
      _
    // Predicated region
    $region22: #{tpu_custom_call.1} parent=1 // pred_check
      _
    $region23: #{tpu_custom_call.1} parent=1 // pred_check_branch
      %24 = sbr.rel (0) target = $region25
    $region24: #{tpu_custom_call.1} parent=1 // pred_region
      _
    $region25: #{tpu_custom_call.1} parent=1 // pred_fallthru
      _
    // Predicated region
    $region26: #{tpu_custom_call.1} parent=1 // pred_check
      _
    $region27: #{tpu_custom_call.1} parent=1 // pred_check_branch
      %26 = sbr.rel (0) target = $region29
    $region28: #{tpu_custom_call.1} parent=1 // pred_region
      _
    $region29: #{tpu_custom_call.1} parent=1 // pred_fallthru
      _
    %v27 = vld [vmem:[%s0] sm:$0xff]
    %v28 = vld [vmem:[%s0 + $0x8] sm:$0xff]
    %v29 = vld [vmem:[%s0 + $0x10] sm:$0xff]
    %v30 = vld [vmem:[%s0 + $0x18] sm:$0xff]
    %v31 = vld [vmem:[%s0 + $0x20] sm:$0xff]
    %v32 = vld [vmem:[%s0 + $0x28] sm:$0xff]
    %v33 = vld [vmem:[%s0 + $0x30] sm:$0xff]
    %v34 = vld [vmem:[%s0 + $0x38] sm:$0xff]
    %v35 = vld [vmem:[%s1] sm:$0xff]
    %v36 = vld [vmem:[%s2] sm:$0x1]
    %v38 = vlaneseq
    %v39 = vshrl.u32 %v38, 7
    %v40 = vsub.s32 0, %v39
    %v41 = vrot.slane %v36, %v40
    %vm43 = vcmask 64512
    %v45 = vsel %vm43, %v27, 0
    %v48 = vsel %vm43, %v28, 0
    %v51 = vsel %vm43, %v29, 0
    %v54 = vsel %vm43, %v30, 0
    %v57 = vsel %vm43, %v31, 0
    %v60 = vsel %vm43, %v32, 0
    %v63 = vsel %vm43, %v33, 0
    %v66 = vsel %vm43, %v34, 0
    %68 = vmatprep.subr.mxu0 0.0
    %69 = vmatpush1.msra.mxu0 %v35
    %70 = vmatprep.subr.mxu0 0.0
    %71 = vmatpush1.msra.mxu0 0.0
    %72 = vmatprep.subr.mxu0 0.0
    %73 = vmatpush1.msra.mxu0 0.0
    %74 = vmatprep.subr.mxu0 0.0
    %75 = vmatpush1.msra.mxu0 0.0
    %76 = vmatprep.subr.mxu0 0.0
    %77 = vmatpush1.msra.mxu0 0.0
    %78 = vmatprep.subr.mxu0 0.0
    %79 = vmatpush1.msra.mxu0 0.0
    %80 = vmatprep.subr.mxu0 0.0
    %81 = vmatpush1.msra.mxu0 0.0
    %82 = vmatprep.subr.mxu0 0.0
    %83 = vmatpush1.msra.mxu0 0.0
    %84 = vmatprep.subr.mxu0 0.0
    %85 = vmatpush1.msra.mxu0 0.0
    %86 = vmatprep.subr.mxu0 0.0
    %87 = vmatpush1.msra.mxu0 0.0
    %88 = vmatprep.subr.mxu0 0.0
    %89 = vmatpush1.msra.mxu0 0.0
    %90 = vmatprep.subr.mxu0 0.0
    %91 = vmatpush1.msra.mxu0 0.0
    %92 = vmatprep.subr.mxu0 0.0
    %93 = vmatpush1.msra.mxu0 0.0
    %94 = vmatprep.subr.mxu0 0.0
    %95 = vmatpush1.msra.mxu0 0.0
    %96 = vmatprep.subr.mxu0 0.0
    %97 = vmatpush1.msra.mxu0 0.0
    %98 = vmatprep.subr.mxu0 0.0
    %99 = vmatpush1.msra.mxu0 0.0
    %100 = vmatprep.subr.mxu0 0.0
    %101 = vmatpush1.msra.mxu0 0.0
    %102 = vmatprep.subr.mxu0 0.0
    %103 = vmatpush1.msra.mxu0 0.0
    %104 = vmatprep.subr.mxu0 0.0
    %105 = vmatpush1.msra.mxu0 0.0
    %106 = vmatprep.subr.mxu0 0.0
    %107 = vmatpush1.msra.mxu0 0.0
    %108 = vmatprep.subr.mxu0 0.0
    %109 = vmatpush1.msra.mxu0 0.0
    %110 = vmatprep.subr.mxu0 0.0
    %111 = vmatpush1.msra.mxu0 0.0
    %112 = vmatprep.subr.mxu0 0.0
    %113 = vmatpush1.msra.mxu0 0.0
    %114 = vmatprep.subr.mxu0 0.0
    %115 = vmatpush1.msra.mxu0 0.0
    %116 = vmatprep.subr.mxu0 0.0
    %117 = vmatpush1.msra.mxu0 0.0
    %118 = vmatprep.subr.mxu0 0.0
    %119 = vmatpush1.msra.mxu0 0.0
    %120 = vmatprep.subr.mxu0 0.0
    %121 = vmatpush1.msra.mxu0 0.0
    %122 = vmatprep.subr.mxu0 0.0
    %123 = vmatpush1.msra.mxu0 0.0
    %124 = vmatprep.subr.mxu0 0.0
    %125 = vmatpush1.msra.mxu0 0.0
    %126 = vmatprep.subr.mxu0 0.0
    %127 = vmatpush1.msra.mxu0 0.0
    %128 = vmatprep.subr.mxu0 0.0
    %129 = vmatpush1.msra.mxu0 0.0
    %130 = vmatprep.subr.mxu0 0.0
    %131 = vmatpush1.msra.mxu0 0.0
    %132 = vmatprep.mubr.f32.mxu0 0.0
    %133 = vmatmul.mubr.f32.gmra.mrb[0].mxu0 %v45
    %v134 = vpop.f32.mrb[0].mxu0
    %v135 = vadd.f32 %v41, %v134
    %v136 = vpop.f32.mrb[0].mxu0
    %137 = vmatprep.mubr.f32.mxu0 0.0
    %138 = vmatmul.mubr.f32.gmra.mrb[0].mxu0 %v48
    %v139 = vpop.f32.mrb[0].mxu0
    %v140 = vadd.f32 %v41, %v139
    %v141 = vpop.f32.mrb[0].mxu0
    %142 = vmatprep.mubr.f32.mxu0 0.0
    %143 = vmatmul.mubr.f32.gmra.mrb[0].mxu0 %v51
    %v144 = vpop.f32.mrb[0].mxu0
    %v145 = vadd.f32 %v41, %v144
    %v146 = vpop.f32.mrb[0].mxu0
    %147 = vmatprep.mubr.f32.mxu0 0.0
    %148 = vmatmul.mubr.f32.gmra.mrb[0].mxu0 %v54
    %v149 = vpop.f32.mrb[0].mxu0
    %v150 = vadd.f32 %v41, %v149
    %v151 = vpop.f32.mrb[0].mxu0
    %152 = vmatprep.mubr.f32.mxu0 0.0
    %153 = vmatmul.mubr.f32.gmra.mrb[0].mxu0 %v57
    %v154 = vpop.f32.mrb[0].mxu0
    %v155 = vadd.f32 %v41, %v154
    %v156 = vpop.f32.mrb[0].mxu0
    %157 = vmatprep.mubr.f32.mxu0 0.0
    %158 = vmatmul.mubr.f32.gmra.mrb[0].mxu0 %v60
    %v159 = vpop.f32.mrb[0].mxu0
    %v160 = vadd.f32 %v41, %v159
    %v161 = vpop.f32.mrb[0].mxu0
    %162 = vmatprep.mubr.f32.mxu0 0.0
    %163 = vmatmul.mubr.f32.gmra.mrb[0].mxu0 %v63
    %v164 = vpop.f32.mrb[0].mxu0
    %v165 = vadd.f32 %v41, %v164
    %v166 = vpop.f32.mrb[0].mxu0
    %167 = vmatprep.mubr.f32.mxu0 0.0
    %168 = vmatmul.mubr.f32.gmra.mrb[0].mxu0 %v66
    %v169 = vpop.f32.mrb[0].mxu0
    %v170 = vadd.f32 %v41, %v169
    %v171 = vpop.f32.mrb[0].mxu0
    %172 = vdwg.mxu0
    %v173 = vmax.f32 %v135, 0.0
    %v174 = vmax.f32 %v140, 0.0
    %v175 = vmax.f32 %v145, 0.0
    %v176 = vmax.f32 %v150, 0.0
    %v177 = vmax.f32 %v155, 0.0
    %v178 = vmax.f32 %v160, 0.0
    %v179 = vmax.f32 %v165, 0.0
    %v180 = vmax.f32 %v170, 0.0
    %v181 = vld [vmem:[%s3] sm:$0xff]
    %v182 = vld [vmem:[%s3 + $0x8] sm:$0xff]
    %v183 = vld [vmem:[%s3 + $0x10] sm:$0xff]
    %v184 = vld [vmem:[%s3 + $0x18] sm:$0xff]
    %v185 = vld [vmem:[%s4] sm:$0x1]
    %v187 = vlaneseq
    %v188 = vshrl.u32 %v187, 7
    %v189 = vsub.s32 0, %v188
    %v190 = vrot.slane %v185, %v189
    %vm192 = vcmask 261120
    %v194 = vsel %vm192, %v173, 0
    %v197 = vsel %vm192, %v174, 0
    %v200 = vsel %vm192, %v175, 0
    %v203 = vsel %vm192, %v176, 0
    %v206 = vsel %vm192, %v177, 0
    %v209 = vsel %vm192, %v178, 0
    %v212 = vsel %vm192, %v179, 0
    %v215 = vsel %vm192, %v180, 0
    %217 = vmatprep.subr.mxu0 0.0
    %218 = vmatpush1.msra.mxu0 %v181
    %219 = vmatprep.subr.mxu0 0.0
    %220 = vmatpush1.msra.mxu0 %v182
    %221 = vmatprep.subr.mxu0 0.0
    %222 = vmatpush1.msra.mxu0 %v183
    %223 = vmatprep.subr.mxu0 0.0
    %224 = vmatpush1.msra.mxu0 %v184
    %225 = vmatprep.subr.mxu0 0.0
    %226 = vmatpush1.msra.mxu0 0.0
    %227 = vmatprep.subr.mxu0 0.0
    %228 = vmatpush1.msra.mxu0 0.0
    %229 = vmatprep.subr.mxu0 0.0
    %230 = vmatpush1.msra.mxu0 0.0
    %231 = vmatprep.subr.mxu0 0.0
    %232 = vmatpush1.msra.mxu0 0.0
    %233 = vmatprep.subr.mxu0 0.0
    %234 = vmatpush1.msra.mxu0 0.0
    %235 = vmatprep.subr.mxu0 0.0
    %236 = vmatpush1.msra.mxu0 0.0
    %237 = vmatprep.subr.mxu0 0.0
    %238 = vmatpush1.msra.mxu0 0.0
    %239 = vmatprep.subr.mxu0 0.0
    %240 = vmatpush1.msra.mxu0 0.0
    %241 = vmatprep.subr.mxu0 0.0
    %242 = vmatpush1.msra.mxu0 0.0
    %243 = vmatprep.subr.mxu0 0.0
    %244 = vmatpush1.msra.mxu0 0.0
    %245 = vmatprep.subr.mxu0 0.0
    %246 = vmatpush1.msra.mxu0 0.0
    %247 = vmatprep.subr.mxu0 0.0
    %248 = vmatpush1.msra.mxu0 0.0
    %249 = vmatprep.subr.mxu0 0.0
    %250 = vmatpush1.msra.mxu0 0.0
    %251 = vmatprep.subr.mxu0 0.0
    %252 = vmatpush1.msra.mxu0 0.0
    %253 = vmatprep.subr.mxu0 0.0
    %254 = vmatpush1.msra.mxu0 0.0
    %255 = vmatprep.subr.mxu0 0.0
    %256 = vmatpush1.msra.mxu0 0.0
    %257 = vmatprep.subr.mxu0 0.0
    %258 = vmatpush1.msra.mxu0 0.0
    %259 = vmatprep.subr.mxu0 0.0
    %260 = vmatpush1.msra.mxu0 0.0
    %261 = vmatprep.subr.mxu0 0.0
    %262 = vmatpush1.msra.mxu0 0.0
    %263 = vmatprep.subr.mxu0 0.0
    %264 = vmatpush1.msra.mxu0 0.0
    %265 = vmatprep.subr.mxu0 0.0
    %266 = vmatpush1.msra.mxu0 0.0
    %267 = vmatprep.subr.mxu0 0.0
    %268 = vmatpush1.msra.mxu0 0.0
    %269 = vmatprep.subr.mxu0 0.0
    %270 = vmatpush1.msra.mxu0 0.0
    %271 = vmatprep.subr.mxu0 0.0
    %272 = vmatpush1.msra.mxu0 0.0
    %273 = vmatprep.subr.mxu0 0.0
    %274 = vmatpush1.msra.mxu0 0.0
    %275 = vmatprep.subr.mxu0 0.0
    %276 = vmatpush1.msra.mxu0 0.0
    %277 = vmatprep.subr.mxu0 0.0
    %278 = vmatpush1.msra.mxu0 0.0
    %279 = vmatprep.subr.mxu0 0.0
    %280 = vmatpush1.msra.mxu0 0.0
    %281 = vmatprep.mubr.f32.mxu0 0.0
    %282 = vmatmul.mubr.f32.gmra.mrb[0].mxu0 %v194
    %v283 = vpop.f32.mrb[0].mxu0
    %v284 = vadd.f32 %v190, %v283
    %v285 = vpop.f32.mrb[0].mxu0
    %286 = vmatprep.mubr.f32.mxu0 0.0
    %287 = vmatmul.mubr.f32.gmra.mrb[0].mxu0 %v197
    %v288 = vpop.f32.mrb[0].mxu0
    %v289 = vadd.f32 %v190, %v288
    %v290 = vpop.f32.mrb[0].mxu0
    %291 = vmatprep.mubr.f32.mxu0 0.0
    %292 = vmatmul.mubr.f32.gmra.mrb[0].mxu0 %v200
    %v293 = vpop.f32.mrb[0].mxu0
    %v294 = vadd.f32 %v190, %v293
    %v295 = vpop.f32.mrb[0].mxu0
    %296 = vmatprep.mubr.f32.mxu0 0.0
    %297 = vmatmul.mubr.f32.gmra.mrb[0].mxu0 %v203
    %v298 = vpop.f32.mrb[0].mxu0
    %v299 = vadd.f32 %v190, %v298
    %v300 = vpop.f32.mrb[0].mxu0
    %301 = vmatprep.mubr.f32.mxu0 0.0
    %302 = vmatmul.mubr.f32.gmra.mrb[0].mxu0 %v206
    %v303 = vpop.f32.mrb[0].mxu0
    %v304 = vadd.f32 %v190, %v303
    %v305 = vpop.f32.mrb[0].mxu0
    %306 = vmatprep.mubr.f32.mxu0 0.0
    %307 = vmatmul.mubr.f32.gmra.mrb[0].mxu0 %v209
    %v308 = vpop.f32.mrb[0].mxu0
    %v309 = vadd.f32 %v190, %v308
    %v310 = vpop.f32.mrb[0].mxu0
    %311 = vmatprep.mubr.f32.mxu0 0.0
    %312 = vmatmul.mubr.f32.gmra.mrb[0].mxu0 %v212
    %v313 = vpop.f32.mrb[0].mxu0
    %v314 = vadd.f32 %v190, %v313
    %v315 = vpop.f32.mrb[0].mxu0
    %316 = vmatprep.mubr.f32.mxu0 0.0
    %317 = vmatmul.mubr.f32.gmra.mrb[0].mxu0 %v215
    %v318 = vpop.f32.mrb[0].mxu0
    %v319 = vadd.f32 %v190, %v318
    %v320 = vpop.f32.mrb[0].mxu0
    %321 = vdwg.mxu0
    %v322 = vld [vmem:[%s5] sm:$0xff]
    %v323 = vld [vmem:[%s5 + $0x8] sm:$0xff]
    %v324 = vld [vmem:[%s5 + $0x10] sm:$0xff]
    %v325 = vld [vmem:[%s5 + $0x18] sm:$0xff]
    %v326 = vld [vmem:[%s6] sm:$0x1]
    %v328 = vlaneseq
    %v329 = vshrl.u32 %v328, 7
    %v330 = vsub.s32 0, %v329
    %v331 = vrot.slane %v326, %v330
    %333 = vmatprep.subr.mxu0 0.0
    %334 = vmatpush1.msra.mxu0 %v322
    %335 = vmatprep.subr.mxu0 0.0
    %336 = vmatpush1.msra.mxu0 %v323
    %337 = vmatprep.subr.mxu0 0.0
    %338 = vmatpush1.msra.mxu0 %v324
    %339 = vmatprep.subr.mxu0 0.0
    %340 = vmatpush1.msra.mxu0 %v325
    %341 = vmatprep.subr.mxu0 0.0
    %342 = vmatpush1.msra.mxu0 0.0
    %343 = vmatprep.subr.mxu0 0.0
    %344 = vmatpush1.msra.mxu0 0.0
    %345 = vmatprep.subr.mxu0 0.0
    %346 = vmatpush1.msra.mxu0 0.0
    %347 = vmatprep.subr.mxu0 0.0
    %348 = vmatpush1.msra.mxu0 0.0
    %349 = vmatprep.subr.mxu0 0.0
    %350 = vmatpush1.msra.mxu0 0.0
    %351 = vmatprep.subr.mxu0 0.0
    %352 = vmatpush1.msra.mxu0 0.0
    %353 = vmatprep.subr.mxu0 0.0
    %354 = vmatpush1.msra.mxu0 0.0
    %355 = vmatprep.subr.mxu0 0.0
    %356 = vmatpush1.msra.mxu0 0.0
    %357 = vmatprep.subr.mxu0 0.0
    %358 = vmatpush1.msra.mxu0 0.0
    %359 = vmatprep.subr.mxu0 0.0
    %360 = vmatpush1.msra.mxu0 0.0
    %361 = vmatprep.subr.mxu0 0.0
    %362 = vmatpush1.msra.mxu0 0.0
    %363 = vmatprep.subr.mxu0 0.0
    %364 = vmatpush1.msra.mxu0 0.0
    %365 = vmatprep.subr.mxu0 0.0
    %366 = vmatpush1.msra.mxu0 0.0
    %367 = vmatprep.subr.mxu0 0.0
    %368 = vmatpush1.msra.mxu0 0.0
    %369 = vmatprep.subr.mxu0 0.0
    %370 = vmatpush1.msra.mxu0 0.0
    %371 = vmatprep.subr.mxu0 0.0
    %372 = vmatpush1.msra.mxu0 0.0
    %373 = vmatprep.subr.mxu0 0.0
    %374 = vmatpush1.msra.mxu0 0.0
    %375 = vmatprep.subr.mxu0 0.0
    %376 = vmatpush1.msra.mxu0 0.0
    %377 = vmatprep.subr.mxu0 0.0
    %378 = vmatpush1.msra.mxu0 0.0
    %379 = vmatprep.subr.mxu0 0.0
    %380 = vmatpush1.msra.mxu0 0.0
    %381 = vmatprep.subr.mxu0 0.0
    %382 = vmatpush1.msra.mxu0 0.0
    %383 = vmatprep.subr.mxu0 0.0
    %384 = vmatpush1.msra.mxu0 0.0
    %385 = vmatprep.subr.mxu0 0.0
    %386 = vmatpush1.msra.mxu0 0.0
    %387 = vmatprep.subr.mxu0 0.0
    %388 = vmatpush1.msra.mxu0 0.0
    %389 = vmatprep.subr.mxu0 0.0
    %390 = vmatpush1.msra.mxu0 0.0
    %391 = vmatprep.subr.mxu0 0.0
    %392 = vmatpush1.msra.mxu0 0.0
    %393 = vmatprep.subr.mxu0 0.0
    %394 = vmatpush1.msra.mxu0 0.0
    %395 = vmatprep.subr.mxu0 0.0
    %396 = vmatpush1.msra.mxu0 0.0
    %397 = vmatprep.mubr.f32.mxu0 0.0
    %398 = vmatmul.mubr.f32.gmra.mrb[0].mxu0 %v194
    %v399 = vpop.f32.mrb[0].mxu0
    %v400 = vadd.f32 %v331, %v399
    %v401 = vpop.f32.mrb[0].mxu0
    %402 = vmatprep.mubr.f32.mxu0 0.0
    %403 = vmatmul.mubr.f32.gmra.mrb[0].mxu0 %v197
    %v404 = vpop.f32.mrb[0].mxu0
    %v405 = vadd.f32 %v331, %v404
    %v406 = vpop.f32.mrb[0].mxu0
    %407 = vmatprep.mubr.f32.mxu0 0.0
    %408 = vmatmul.mubr.f32.gmra.mrb[0].mxu0 %v200
    %v409 = vpop.f32.mrb[0].mxu0
    %v410 = vadd.f32 %v331, %v409
    %v411 = vpop.f32.mrb[0].mxu0
    %412 = vmatprep.mubr.f32.mxu0 0.0
    %413 = vmatmul.mubr.f32.gmra.mrb[0].mxu0 %v203
    %v414 = vpop.f32.mrb[0].mxu0
    %v415 = vadd.f32 %v331, %v414
    %v416 = vpop.f32.mrb[0].mxu0
    %417 = vmatprep.mubr.f32.mxu0 0.0
    %418 = vmatmul.mubr.f32.gmra.mrb[0].mxu0 %v206
    %v419 = vpop.f32.mrb[0].mxu0
    %v420 = vadd.f32 %v331, %v419
    %v421 = vpop.f32.mrb[0].mxu0
    %422 = vmatprep.mubr.f32.mxu0 0.0
    %423 = vmatmul.mubr.f32.gmra.mrb[0].mxu0 %v209
    %v424 = vpop.f32.mrb[0].mxu0
    %v425 = vadd.f32 %v331, %v424
    %v426 = vpop.f32.mrb[0].mxu0
    %427 = vmatprep.mubr.f32.mxu0 0.0
    %428 = vmatmul.mubr.f32.gmra.mrb[0].mxu0 %v212
    %v429 = vpop.f32.mrb[0].mxu0
    %v430 = vadd.f32 %v331, %v429
    %v431 = vpop.f32.mrb[0].mxu0
    %432 = vmatprep.mubr.f32.mxu0 0.0
    %433 = vmatmul.mubr.f32.gmra.mrb[0].mxu0 %v215
    %v434 = vpop.f32.mrb[0].mxu0
    %v435 = vadd.f32 %v331, %v434
    %v436 = vpop.f32.mrb[0].mxu0
    %437 = vdwg.mxu0
    %vm438 = vcmask 31744
    %v439 = vsel %vm438, %v284, -inf
    %440 = vmax.xlane.f32.xlu0 %v439
    %v441 = vpop.xlane.xlu0 %440
    %v442 = vsel %vm438, %v289, -inf
    %443 = vmax.xlane.f32.xlu0 %v442
    %v444 = vpop.xlane.xlu0 %443
    %v445 = vsel %vm438, %v294, -inf
    %446 = vmax.xlane.f32.xlu0 %v445
    %v447 = vpop.xlane.xlu0 %446
    %v448 = vsel %vm438, %v299, -inf
    %449 = vmax.xlane.f32.xlu0 %v448
    %v450 = vpop.xlane.xlu0 %449
    %v451 = vsel %vm438, %v304, -inf
    %452 = vmax.xlane.f32.xlu0 %v451
    %v453 = vpop.xlane.xlu0 %452
    %v454 = vsel %vm438, %v309, -inf
    %455 = vmax.xlane.f32.xlu0 %v454
    %v456 = vpop.xlane.xlu0 %455
    %v457 = vsel %vm438, %v314, -inf
    %458 = vmax.xlane.f32.xlu0 %v457
    %v459 = vpop.xlane.xlu0 %458
    %v460 = vsel %vm438, %v319, -inf
    %461 = vmax.xlane.f32.xlu0 %v460
    %v462 = vpop.xlane.xlu0 %461
    %v463 = vsub.f32 %v284, %v441
    %v464 = vsub.f32 %v289, %v444
    %v465 = vsub.f32 %v294, %v447
    %v466 = vsub.f32 %v299, %v450
    %v467 = vsub.f32 %v304, %v453
    %v468 = vsub.f32 %v309, %v456
    %v469 = vsub.f32 %v314, %v459
    %v470 = vsub.f32 %v319, %v462
    %v471 = vmul.f32 %v463, 1.442695
    %v472 = vpow.pop %v471
    %v473 = vmul.f32 %v464, 1.442695
    %v474 = vpow.pop %v473
    %v475 = vmul.f32 %v465, 1.442695
    %v476 = vpow.pop %v475
    %v477 = vmul.f32 %v466, 1.442695
    %v478 = vpow.pop %v477
    %v479 = vmul.f32 %v467, 1.442695
    %v480 = vpow.pop %v479
    %v481 = vmul.f32 %v468, 1.442695
    %v482 = vpow.pop %v481
    %v483 = vmul.f32 %v469, 1.442695
    %v484 = vpow.pop %v483
    %v485 = vmul.f32 %v470, 1.442695
    %v486 = vpow.pop %v485
    %v487 = vsel %vm438, %v472, 0.0
    %488 = vadd.xlane.f32.xlu0 %v487
    %v489 = vpop.xlane.xlu0 %488
    %v490 = vsel %vm438, %v474, 0.0
    %491 = vadd.xlane.f32.xlu0 %v490
    %v492 = vpop.xlane.xlu0 %491
    %v493 = vsel %vm438, %v476, 0.0
    %494 = vadd.xlane.f32.xlu0 %v493
    %v495 = vpop.xlane.xlu0 %494
    %v496 = vsel %vm438, %v478, 0.0
    %497 = vadd.xlane.f32.xlu0 %v496
    %v498 = vpop.xlane.xlu0 %497
    %v499 = vsel %vm438, %v480, 0.0
    %500 = vadd.xlane.f32.xlu0 %v499
    %v501 = vpop.xlane.xlu0 %500
    %v502 = vsel %vm438, %v482, 0.0
    %503 = vadd.xlane.f32.xlu0 %v502
    %v504 = vpop.xlane.xlu0 %503
    %v505 = vsel %vm438, %v484, 0.0
    %506 = vadd.xlane.f32.xlu0 %v505
    %v507 = vpop.xlane.xlu0 %506
    %v508 = vsel %vm438, %v486, 0.0
    %509 = vadd.xlane.f32.xlu0 %v508
    %v510 = vpop.xlane.xlu0 %509
    %v511 = vrcp.pop %v489
    %v512 = vrcp.pop %v492
    %v513 = vrcp.pop %v495
    %v514 = vrcp.pop %v498
    %v515 = vrcp.pop %v501
    %v516 = vrcp.pop %v504
    %v517 = vrcp.pop %v507
    %v518 = vrcp.pop %v510
    %v519 = vmul.f32 %v472, %v511
    %v520 = vmul.f32 %v474, %v512
    %v521 = vmul.f32 %v476, %v513
    %v522 = vmul.f32 %v478, %v514
    %v523 = vmul.f32 %v480, %v515
    %v524 = vmul.f32 %v482, %v516
    %v525 = vmul.f32 %v484, %v517
    %v526 = vmul.f32 %v486, %v518
    %v527 = vlaneseq
    %v528 = vshrl.u32 %v527, 7
    %v529 = vsub.s32 0, %v528
    %v530 = vrot.slane %v519, %v529
    %532 = vbcast.lane.b32.xlu0 %v530, 256
    %v533 = vpop.permute.xlu0 %532
    %v534 = vlaneseq
    %v535 = vshrl.u32 %v534, 7
    %v536 = vsub.s32 1, %v535
    %v537 = vrot.slane %v519, %v536
    %539 = vbcast.lane.b32.xlu0 %v537, 256
    %v540 = vpop.permute.xlu0 %539
    %v541 = vlaneseq
    %v542 = vshrl.u32 %v541, 7
    %v543 = vsub.s32 2, %v542
    %v544 = vrot.slane %v519, %v543
    %546 = vbcast.lane.b32.xlu0 %v544, 256
    %v547 = vpop.permute.xlu0 %546
    %v548 = vlaneseq
    %v549 = vshrl.u32 %v548, 7
    %v550 = vsub.s32 3, %v549
    %v551 = vrot.slane %v519, %v550
    %553 = vbcast.lane.b32.xlu0 %v551, 256
    %v554 = vpop.permute.xlu0 %553
    %v555 = vlaneseq
    %v556 = vshrl.u32 %v555, 7
    %v557 = vsub.s32 4, %v556
    %v558 = vrot.slane %v519, %v557
    %560 = vbcast.lane.b32.xlu0 %v558, 256
    %v561 = vpop.permute.xlu0 %560
    %v562 = vlaneseq
    %v563 = vshrl.u32 %v562, 7
    %v564 = vsub.s32 5, %v563
    %v565 = vrot.slane %v519, %v564
    %567 = vbcast.lane.b32.xlu0 %v565, 256
    %v568 = vpop.permute.xlu0 %567
    %v569 = vlaneseq
    %v570 = vshrl.u32 %v569, 7
    %v571 = vsub.s32 6, %v570
    %v572 = vrot.slane %v519, %v571
    %574 = vbcast.lane.b32.xlu0 %v572, 256
    %v575 = vpop.permute.xlu0 %574
    %v576 = vlaneseq
    %v577 = vshrl.u32 %v576, 7
    %v578 = vsub.s32 7, %v577
    %v579 = vrot.slane %v519, %v578
    %581 = vbcast.lane.b32.xlu0 %v579, 256
    %v582 = vpop.permute.xlu0 %581
    %v583 = vlaneseq
    %v584 = vshrl.u32 %v583, 7
    %v585 = vsub.s32 0, %v584
    %v586 = vrot.slane %v520, %v585
    %588 = vbcast.lane.b32.xlu0 %v586, 256
    %v589 = vpop.permute.xlu0 %588
    %v590 = vlaneseq
    %v591 = vshrl.u32 %v590, 7
    %v592 = vsub.s32 1, %v591
    %v593 = vrot.slane %v520, %v592
    %595 = vbcast.lane.b32.xlu0 %v593, 256
    %v596 = vpop.permute.xlu0 %595
    %v597 = vlaneseq
    %v598 = vshrl.u32 %v597, 7
    %v599 = vsub.s32 2, %v598
    %v600 = vrot.slane %v520, %v599
    %602 = vbcast.lane.b32.xlu0 %v600, 256
    %v603 = vpop.permute.xlu0 %602
    %v604 = vlaneseq
    %v605 = vshrl.u32 %v604, 7
    %v606 = vsub.s32 3, %v605
    %v607 = vrot.slane %v520, %v606
    %609 = vbcast.lane.b32.xlu0 %v607, 256
    %v610 = vpop.permute.xlu0 %609
    %v611 = vlaneseq
    %v612 = vshrl.u32 %v611, 7
    %v613 = vsub.s32 4, %v612
    %v614 = vrot.slane %v520, %v613
    %616 = vbcast.lane.b32.xlu0 %v614, 256
    %v617 = vpop.permute.xlu0 %616
    %v618 = vlaneseq
    %v619 = vshrl.u32 %v618, 7
    %v620 = vsub.s32 5, %v619
    %v621 = vrot.slane %v520, %v620
    %623 = vbcast.lane.b32.xlu0 %v621, 256
    %v624 = vpop.permute.xlu0 %623
    %v625 = vlaneseq
    %v626 = vshrl.u32 %v625, 7
    %v627 = vsub.s32 6, %v626
    %v628 = vrot.slane %v520, %v627
    %630 = vbcast.lane.b32.xlu0 %v628, 256
    %v631 = vpop.permute.xlu0 %630
    %v632 = vlaneseq
    %v633 = vshrl.u32 %v632, 7
    %v634 = vsub.s32 7, %v633
    %v635 = vrot.slane %v520, %v634
    %637 = vbcast.lane.b32.xlu0 %v635, 256
    %v638 = vpop.permute.xlu0 %637
    %v639 = vlaneseq
    %v640 = vshrl.u32 %v639, 7
    %v641 = vsub.s32 0, %v640
    %v642 = vrot.slane %v521, %v641
    %644 = vbcast.lane.b32.xlu0 %v642, 256
    %v645 = vpop.permute.xlu0 %644
    %v646 = vlaneseq
    %v647 = vshrl.u32 %v646, 7
    %v648 = vsub.s32 1, %v647
    %v649 = vrot.slane %v521, %v648
    %651 = vbcast.lane.b32.xlu0 %v649, 256
    %v652 = vpop.permute.xlu0 %651
    %v653 = vlaneseq
    %v654 = vshrl.u32 %v653, 7
    %v655 = vsub.s32 2, %v654
    %v656 = vrot.slane %v521, %v655
    %658 = vbcast.lane.b32.xlu0 %v656, 256
    %v659 = vpop.permute.xlu0 %658
    %v660 = vlaneseq
    %v661 = vshrl.u32 %v660, 7
    %v662 = vsub.s32 3, %v661
    %v663 = vrot.slane %v521, %v662
    %665 = vbcast.lane.b32.xlu0 %v663, 256
    %v666 = vpop.permute.xlu0 %665
    %v667 = vlaneseq
    %v668 = vshrl.u32 %v667, 7
    %v669 = vsub.s32 4, %v668
    %v670 = vrot.slane %v521, %v669
    %672 = vbcast.lane.b32.xlu0 %v670, 256
    %v673 = vpop.permute.xlu0 %672
    %v674 = vlaneseq
    %v675 = vshrl.u32 %v674, 7
    %v676 = vsub.s32 5, %v675
    %v677 = vrot.slane %v521, %v676
    %679 = vbcast.lane.b32.xlu0 %v677, 256
    %v680 = vpop.permute.xlu0 %679
    %v681 = vlaneseq
    %v682 = vshrl.u32 %v681, 7
    %v683 = vsub.s32 6, %v682
    %v684 = vrot.slane %v521, %v683
    %686 = vbcast.lane.b32.xlu0 %v684, 256
    %v687 = vpop.permute.xlu0 %686
    %v688 = vlaneseq
    %v689 = vshrl.u32 %v688, 7
    %v690 = vsub.s32 7, %v689
    %v691 = vrot.slane %v521, %v690
    %693 = vbcast.lane.b32.xlu0 %v691, 256
    %v694 = vpop.permute.xlu0 %693
    %v695 = vlaneseq
    %v696 = vshrl.u32 %v695, 7
    %v697 = vsub.s32 0, %v696
    %v698 = vrot.slane %v522, %v697
    %700 = vbcast.lane.b32.xlu0 %v698, 256
    %v701 = vpop.permute.xlu0 %700
    %v702 = vlaneseq
    %v703 = vshrl.u32 %v702, 7
    %v704 = vsub.s32 1, %v703
    %v705 = vrot.slane %v522, %v704
    %707 = vbcast.lane.b32.xlu0 %v705, 256
    %v708 = vpop.permute.xlu0 %707
    %v709 = vlaneseq
    %v710 = vshrl.u32 %v709, 7
    %v711 = vsub.s32 2, %v710
    %v712 = vrot.slane %v522, %v711
    %714 = vbcast.lane.b32.xlu0 %v712, 256
    %v715 = vpop.permute.xlu0 %714
    %v716 = vlaneseq
    %v717 = vshrl.u32 %v716, 7
    %v718 = vsub.s32 3, %v717
    %v719 = vrot.slane %v522, %v718
    %721 = vbcast.lane.b32.xlu0 %v719, 256
    %v722 = vpop.permute.xlu0 %721
    %v723 = vlaneseq
    %v724 = vshrl.u32 %v723, 7
    %v725 = vsub.s32 4, %v724
    %v726 = vrot.slane %v522, %v725
    %728 = vbcast.lane.b32.xlu0 %v726, 256
    %v729 = vpop.permute.xlu0 %728
    %v730 = vlaneseq
    %v731 = vshrl.u32 %v730, 7
    %v732 = vsub.s32 5, %v731
    %v733 = vrot.slane %v522, %v732
    %735 = vbcast.lane.b32.xlu0 %v733, 256
    %v736 = vpop.permute.xlu0 %735
    %v737 = vlaneseq
    %v738 = vshrl.u32 %v737, 7
    %v739 = vsub.s32 6, %v738
    %v740 = vrot.slane %v522, %v739
    %742 = vbcast.lane.b32.xlu0 %v740, 256
    %v743 = vpop.permute.xlu0 %742
    %v744 = vlaneseq
    %v745 = vshrl.u32 %v744, 7
    %v746 = vsub.s32 7, %v745
    %v747 = vrot.slane %v522, %v746
    %749 = vbcast.lane.b32.xlu0 %v747, 256
    %v750 = vpop.permute.xlu0 %749
    %v751 = vlaneseq
    %v752 = vshrl.u32 %v751, 7
    %v753 = vsub.s32 0, %v752
    %v754 = vrot.slane %v523, %v753
    %756 = vbcast.lane.b32.xlu0 %v754, 256
    %v757 = vpop.permute.xlu0 %756
    %v758 = vlaneseq
    %v759 = vshrl.u32 %v758, 7
    %v760 = vsub.s32 1, %v759
    %v761 = vrot.slane %v523, %v760
    %763 = vbcast.lane.b32.xlu0 %v761, 256
    %v764 = vpop.permute.xlu0 %763
    %v765 = vlaneseq
    %v766 = vshrl.u32 %v765, 7
    %v767 = vsub.s32 2, %v766
    %v768 = vrot.slane %v523, %v767
    %770 = vbcast.lane.b32.xlu0 %v768, 256
    %v771 = vpop.permute.xlu0 %770
    %v772 = vlaneseq
    %v773 = vshrl.u32 %v772, 7
    %v774 = vsub.s32 3, %v773
    %v775 = vrot.slane %v523, %v774
    %777 = vbcast.lane.b32.xlu0 %v775, 256
    %v778 = vpop.permute.xlu0 %777
    %v779 = vlaneseq
    %v780 = vshrl.u32 %v779, 7
    %v781 = vsub.s32 4, %v780
    %v782 = vrot.slane %v523, %v781
    %784 = vbcast.lane.b32.xlu0 %v782, 256
    %v785 = vpop.permute.xlu0 %784
    %v786 = vlaneseq
    %v787 = vshrl.u32 %v786, 7
    %v788 = vsub.s32 5, %v787
    %v789 = vrot.slane %v523, %v788
    %791 = vbcast.lane.b32.xlu0 %v789, 256
    %v792 = vpop.permute.xlu0 %791
    %v793 = vlaneseq
    %v794 = vshrl.u32 %v793, 7
    %v795 = vsub.s32 6, %v794
    %v796 = vrot.slane %v523, %v795
    %798 = vbcast.lane.b32.xlu0 %v796, 256
    %v799 = vpop.permute.xlu0 %798
    %v800 = vlaneseq
    %v801 = vshrl.u32 %v800, 7
    %v802 = vsub.s32 7, %v801
    %v803 = vrot.slane %v523, %v802
    %805 = vbcast.lane.b32.xlu0 %v803, 256
    %v806 = vpop.permute.xlu0 %805
    %v807 = vlaneseq
    %v808 = vshrl.u32 %v807, 7
    %v809 = vsub.s32 0, %v808
    %v810 = vrot.slane %v524, %v809
    %812 = vbcast.lane.b32.xlu0 %v810, 256
    %v813 = vpop.permute.xlu0 %812
    %v814 = vlaneseq
    %v815 = vshrl.u32 %v814, 7
    %v816 = vsub.s32 1, %v815
    %v817 = vrot.slane %v524, %v816
    %819 = vbcast.lane.b32.xlu0 %v817, 256
    %v820 = vpop.permute.xlu0 %819
    %v821 = vlaneseq
    %v822 = vshrl.u32 %v821, 7
    %v823 = vsub.s32 2, %v822
    %v824 = vrot.slane %v524, %v823
    %826 = vbcast.lane.b32.xlu0 %v824, 256
    %v827 = vpop.permute.xlu0 %826
    %v828 = vlaneseq
    %v829 = vshrl.u32 %v828, 7
    %v830 = vsub.s32 3, %v829
    %v831 = vrot.slane %v524, %v830
    %833 = vbcast.lane.b32.xlu0 %v831, 256
    %v834 = vpop.permute.xlu0 %833
    %v835 = vlaneseq
    %v836 = vshrl.u32 %v835, 7
    %v837 = vsub.s32 4, %v836
    %v838 = vrot.slane %v524, %v837
    %840 = vbcast.lane.b32.xlu0 %v838, 256
    %v841 = vpop.permute.xlu0 %840
    %v842 = vlaneseq
    %v843 = vshrl.u32 %v842, 7
    %v844 = vsub.s32 5, %v843
    %v845 = vrot.slane %v524, %v844
    %847 = vbcast.lane.b32.xlu0 %v845, 256
    %v848 = vpop.permute.xlu0 %847
    %v849 = vlaneseq
    %v850 = vshrl.u32 %v849, 7
    %v851 = vsub.s32 6, %v850
    %v852 = vrot.slane %v524, %v851
    %854 = vbcast.lane.b32.xlu0 %v852, 256
    %v855 = vpop.permute.xlu0 %854
    %v856 = vlaneseq
    %v857 = vshrl.u32 %v856, 7
    %v858 = vsub.s32 7, %v857
    %v859 = vrot.slane %v524, %v858
    %861 = vbcast.lane.b32.xlu0 %v859, 256
    %v862 = vpop.permute.xlu0 %861
    %v863 = vlaneseq
    %v864 = vshrl.u32 %v863, 7
    %v865 = vsub.s32 0, %v864
    %v866 = vrot.slane %v525, %v865
    %868 = vbcast.lane.b32.xlu0 %v866, 256
    %v869 = vpop.permute.xlu0 %868
    %v870 = vlaneseq
    %v871 = vshrl.u32 %v870, 7
    %v872 = vsub.s32 1, %v871
    %v873 = vrot.slane %v525, %v872
    %875 = vbcast.lane.b32.xlu0 %v873, 256
    %v876 = vpop.permute.xlu0 %875
    %v877 = vlaneseq
    %v878 = vshrl.u32 %v877, 7
    %v879 = vsub.s32 2, %v878
    %v880 = vrot.slane %v525, %v879
    %882 = vbcast.lane.b32.xlu0 %v880, 256
    %v883 = vpop.permute.xlu0 %882
    %v884 = vlaneseq
    %v885 = vshrl.u32 %v884, 7
    %v886 = vsub.s32 3, %v885
    %v887 = vrot.slane %v525, %v886
    %889 = vbcast.lane.b32.xlu0 %v887, 256
    %v890 = vpop.permute.xlu0 %889
    %v891 = vlaneseq
    %v892 = vshrl.u32 %v891, 7
    %v893 = vsub.s32 4, %v892
    %v894 = vrot.slane %v525, %v893
    %896 = vbcast.lane.b32.xlu0 %v894, 256
    %v897 = vpop.permute.xlu0 %896
    %v898 = vlaneseq
    %v899 = vshrl.u32 %v898, 7
    %v900 = vsub.s32 5, %v899
    %v901 = vrot.slane %v525, %v900
    %903 = vbcast.lane.b32.xlu0 %v901, 256
    %v904 = vpop.permute.xlu0 %903
    %v905 = vlaneseq
    %v906 = vshrl.u32 %v905, 7
    %v907 = vsub.s32 6, %v906
    %v908 = vrot.slane %v525, %v907
    %910 = vbcast.lane.b32.xlu0 %v908, 256
    %v911 = vpop.permute.xlu0 %910
    %v912 = vlaneseq
    %v913 = vshrl.u32 %v912, 7
    %v914 = vsub.s32 7, %v913
    %v915 = vrot.slane %v525, %v914
    %917 = vbcast.lane.b32.xlu0 %v915, 256
    %v918 = vpop.permute.xlu0 %917
    %v919 = vlaneseq
    %v920 = vshrl.u32 %v919, 7
    %v921 = vsub.s32 0, %v920
    %v922 = vrot.slane %v526, %v921
    %924 = vbcast.lane.b32.xlu0 %v922, 256
    %v925 = vpop.permute.xlu0 %924
    %v926 = vlaneseq
    %v927 = vshrl.u32 %v926, 7
    %v928 = vsub.s32 1, %v927
    %v929 = vrot.slane %v526, %v928
    %931 = vbcast.lane.b32.xlu0 %v929, 256
    %v932 = vpop.permute.xlu0 %931
    %v933 = vlaneseq
    %v934 = vshrl.u32 %v933, 7
    %v935 = vsub.s32 2, %v934
    %v936 = vrot.slane %v526, %v935
    %938 = vbcast.lane.b32.xlu0 %v936, 256
    %v939 = vpop.permute.xlu0 %938
    %v940 = vlaneseq
    %v941 = vshrl.u32 %v940, 7
    %v942 = vsub.s32 3, %v941
    %v943 = vrot.slane %v526, %v942
    %945 = vbcast.lane.b32.xlu0 %v943, 256
    %v946 = vpop.permute.xlu0 %945
    %v947 = vlaneseq
    %v948 = vshrl.u32 %v947, 7
    %v949 = vsub.s32 4, %v948
    %v950 = vrot.slane %v526, %v949
    %952 = vbcast.lane.b32.xlu0 %v950, 256
    %v953 = vpop.permute.xlu0 %952
    %v954 = vlaneseq
    %v955 = vshrl.u32 %v954, 7
    %v956 = vsub.s32 5, %v955
    %v957 = vrot.slane %v526, %v956
    %959 = vbcast.lane.b32.xlu0 %v957, 256
    %v960 = vpop.permute.xlu0 %959
    %v961 = vlaneseq
    %v962 = vshrl.u32 %v961, 7
    %v963 = vsub.s32 6, %v962
    %v964 = vrot.slane %v526, %v963
    %966 = vbcast.lane.b32.xlu0 %v964, 256
    %v967 = vpop.permute.xlu0 %966
    %v968 = vlaneseq
    %v969 = vshrl.u32 %v968, 7
    %v970 = vsub.s32 7, %v969
    %v971 = vrot.slane %v526, %v970
    %973 = vbcast.lane.b32.xlu0 %v971, 256
    %v974 = vpop.permute.xlu0 %973
    %v983 = vcombine.high %v400, %v400
    %v985 = vunpack.c.l.s4 1966171168
    %v986 = vunpack.c.0.s8 %v985
    %v987 = vlaneseq
    %v988 = vshrl.u32 %v987, 7
    %v989 = vsub.s32 %v986, %v988
    %v990 = vrot.slane %v400, %v989
    %v992 = vunpack.c.l.s4 1966171168
    %v993 = vunpack.c.0.s8 %v992
    %v994 = vlaneseq
    %v995 = vshrl.u32 %v994, 7
    %v996 = vsub.s32 %v993, %v995
    %v997 = vrot.slane %v983, %v996
    %v998 = vcombine.high %v990, %v990
    %v999 = vcombine.high %v997, %v997
    %v1001 = vunpack.c.l.s4 1966171168
    %v1002 = vunpack.c.0.s8 %v1001
    %v1003 = vlaneseq
    %v1004 = vshrl.u32 %v1003, 7
    %v1005 = vsub.s32 %v1002, %v1004
    %v1006 = vrot.slane %v990, %v1005
    %v1008 = vunpack.c.l.s4 1966171168
    %v1009 = vunpack.c.0.s8 %v1008
    %v1010 = vlaneseq
    %v1011 = vshrl.u32 %v1010, 7
    %v1012 = vsub.s32 %v1009, %v1011
    %v1013 = vrot.slane %v997, %v1012
    %v1015 = vunpack.c.l.s4 1966171168
    %v1016 = vunpack.c.0.s8 %v1015
    %v1017 = vlaneseq
    %v1018 = vshrl.u32 %v1017, 7
    %v1019 = vsub.s32 %v1016, %v1018
    %v1020 = vrot.slane %v998, %v1019
    %v1022 = vunpack.c.l.s4 1966171168
    %v1023 = vunpack.c.0.s8 %v1022
    %v1024 = vlaneseq
    %v1025 = vshrl.u32 %v1024, 7
    %v1026 = vsub.s32 %v1023, %v1025
    %v1027 = vrot.slane %v999, %v1026
    %v1028 = vcombine.high %v1006, %v1006
    %v1029 = vcombine.high %v1013, %v1013
    %v1030 = vcombine.high %v1020, %v1020
    %v1031 = vcombine.high %v1027, %v1027
    %v1032 = vcombine.high %v405, %v405
    %v1034 = vunpack.c.l.s4 1966171168
    %v1035 = vunpack.c.0.s8 %v1034
    %v1036 = vlaneseq
    %v1037 = vshrl.u32 %v1036, 7
    %v1038 = vsub.s32 %v1035, %v1037
    %v1039 = vrot.slane %v405, %v1038
    %v1041 = vunpack.c.l.s4 1966171168
    %v1042 = vunpack.c.0.s8 %v1041
    %v1043 = vlaneseq
    %v1044 = vshrl.u32 %v1043, 7
    %v1045 = vsub.s32 %v1042, %v1044
    %v1046 = vrot.slane %v1032, %v1045
    %v1047 = vcombine.high %v1039, %v1039
    %v1048 = vcombine.high %v1046, %v1046
    %v1050 = vunpack.c.l.s4 1966171168
    %v1051 = vunpack.c.0.s8 %v1050
    %v1052 = vlaneseq
    %v1053 = vshrl.u32 %v1052, 7
    %v1054 = vsub.s32 %v1051, %v1053
    %v1055 = vrot.slane %v1039, %v1054
    %v1057 = vunpack.c.l.s4 1966171168
    %v1058 = vunpack.c.0.s8 %v1057
    %v1059 = vlaneseq
    %v1060 = vshrl.u32 %v1059, 7
    %v1061 = vsub.s32 %v1058, %v1060
    %v1062 = vrot.slane %v1046, %v1061
    %v1064 = vunpack.c.l.s4 1966171168
    %v1065 = vunpack.c.0.s8 %v1064
    %v1066 = vlaneseq
    %v1067 = vshrl.u32 %v1066, 7
    %v1068 = vsub.s32 %v1065, %v1067
    %v1069 = vrot.slane %v1047, %v1068
    %v1071 = vunpack.c.l.s4 1966171168
    %v1072 = vunpack.c.0.s8 %v1071
    %v1073 = vlaneseq
    %v1074 = vshrl.u32 %v1073, 7
    %v1075 = vsub.s32 %v1072, %v1074
    %v1076 = vrot.slane %v1048, %v1075
    %v1077 = vcombine.high %v1055, %v1055
    %v1078 = vcombine.high %v1062, %v1062
    %v1079 = vcombine.high %v1069, %v1069
    %v1080 = vcombine.high %v1076, %v1076
    %v1081 = vcombine.high %v410, %v410
    %v1083 = vunpack.c.l.s4 1966171168
    %v1084 = vunpack.c.0.s8 %v1083
    %v1085 = vlaneseq
    %v1086 = vshrl.u32 %v1085, 7
    %v1087 = vsub.s32 %v1084, %v1086
    %v1088 = vrot.slane %v410, %v1087
    %v1090 = vunpack.c.l.s4 1966171168
    %v1091 = vunpack.c.0.s8 %v1090
    %v1092 = vlaneseq
    %v1093 = vshrl.u32 %v1092, 7
    %v1094 = vsub.s32 %v1091, %v1093
    %v1095 = vrot.slane %v1081, %v1094
    %v1096 = vcombine.high %v1088, %v1088
    %v1097 = vcombine.high %v1095, %v1095
    %v1099 = vunpack.c.l.s4 1966171168
    %v1100 = vunpack.c.0.s8 %v1099
    %v1101 = vlaneseq
    %v1102 = vshrl.u32 %v1101, 7
    %v1103 = vsub.s32 %v1100, %v1102
    %v1104 = vrot.slane %v1088, %v1103
    %v1106 = vunpack.c.l.s4 1966171168
    %v1107 = vunpack.c.0.s8 %v1106
    %v1108 = vlaneseq
    %v1109 = vshrl.u32 %v1108, 7
    %v1110 = vsub.s32 %v1107, %v1109
    %v1111 = vrot.slane %v1095, %v1110
    %v1113 = vunpack.c.l.s4 1966171168
    %v1114 = vunpack.c.0.s8 %v1113
    %v1115 = vlaneseq
    %v1116 = vshrl.u32 %v1115, 7
    %v1117 = vsub.s32 %v1114, %v1116
    %v1118 = vrot.slane %v1096, %v1117
    %v1120 = vunpack.c.l.s4 1966171168
    %v1121 = vunpack.c.0.s8 %v1120
    %v1122 = vlaneseq
    %v1123 = vshrl.u32 %v1122, 7
    %v1124 = vsub.s32 %v1121, %v1123
    %v1125 = vrot.slane %v1097, %v1124
    %v1126 = vcombine.high %v1104, %v1104
    %v1127 = vcombine.high %v1111, %v1111
    %v1128 = vcombine.high %v1118, %v1118
    %v1129 = vcombine.high %v1125, %v1125
    %v1130 = vcombine.high %v415, %v415
    %v1132 = vunpack.c.l.s4 1966171168
    %v1133 = vunpack.c.0.s8 %v1132
    %v1134 = vlaneseq
    %v1135 = vshrl.u32 %v1134, 7
    %v1136 = vsub.s32 %v1133, %v1135
    %v1137 = vrot.slane %v415, %v1136
    %v1139 = vunpack.c.l.s4 1966171168
    %v1140 = vunpack.c.0.s8 %v1139
    %v1141 = vlaneseq
    %v1142 = vshrl.u32 %v1141, 7
    %v1143 = vsub.s32 %v1140, %v1142
    %v1144 = vrot.slane %v1130, %v1143
    %v1145 = vcombine.high %v1137, %v1137
    %v1146 = vcombine.high %v1144, %v1144
    %v1148 = vunpack.c.l.s4 1966171168
    %v1149 = vunpack.c.0.s8 %v1148
    %v1150 = vlaneseq
    %v1151 = vshrl.u32 %v1150, 7
    %v1152 = vsub.s32 %v1149, %v1151
    %v1153 = vrot.slane %v1137, %v1152
    %v1155 = vunpack.c.l.s4 1966171168
    %v1156 = vunpack.c.0.s8 %v1155
    %v1157 = vlaneseq
    %v1158 = vshrl.u32 %v1157, 7
    %v1159 = vsub.s32 %v1156, %v1158
    %v1160 = vrot.slane %v1144, %v1159
    %v1162 = vunpack.c.l.s4 1966171168
    %v1163 = vunpack.c.0.s8 %v1162
    %v1164 = vlaneseq
    %v1165 = vshrl.u32 %v1164, 7
    %v1166 = vsub.s32 %v1163, %v1165
    %v1167 = vrot.slane %v1145, %v1166
    %v1169 = vunpack.c.l.s4 1966171168
    %v1170 = vunpack.c.0.s8 %v1169
    %v1171 = vlaneseq
    %v1172 = vshrl.u32 %v1171, 7
    %v1173 = vsub.s32 %v1170, %v1172
    %v1174 = vrot.slane %v1146, %v1173
    %v1175 = vcombine.high %v1153, %v1153
    %v1176 = vcombine.high %v1160, %v1160
    %v1177 = vcombine.high %v1167, %v1167
    %v1178 = vcombine.high %v1174, %v1174
    %v1179 = vcombine.high %v420, %v420
    %v1181 = vunpack.c.l.s4 1966171168
    %v1182 = vunpack.c.0.s8 %v1181
    %v1183 = vlaneseq
    %v1184 = vshrl.u32 %v1183, 7
    %v1185 = vsub.s32 %v1182, %v1184
    %v1186 = vrot.slane %v420, %v1185
    %v1188 = vunpack.c.l.s4 1966171168
    %v1189 = vunpack.c.0.s8 %v1188
    %v1190 = vlaneseq
    %v1191 = vshrl.u32 %v1190, 7
    %v1192 = vsub.s32 %v1189, %v1191
    %v1193 = vrot.slane %v1179, %v1192
    %v1194 = vcombine.high %v1186, %v1186
    %v1195 = vcombine.high %v1193, %v1193
    %v1197 = vunpack.c.l.s4 1966171168
    %v1198 = vunpack.c.0.s8 %v1197
    %v1199 = vlaneseq
    %v1200 = vshrl.u32 %v1199, 7
    %v1201 = vsub.s32 %v1198, %v1200
    %v1202 = vrot.slane %v1186, %v1201
    %v1204 = vunpack.c.l.s4 1966171168
    %v1205 = vunpack.c.0.s8 %v1204
    %v1206 = vlaneseq
    %v1207 = vshrl.u32 %v1206, 7
    %v1208 = vsub.s32 %v1205, %v1207
    %v1209 = vrot.slane %v1193, %v1208
    %v1211 = vunpack.c.l.s4 1966171168
    %v1212 = vunpack.c.0.s8 %v1211
    %v1213 = vlaneseq
    %v1214 = vshrl.u32 %v1213, 7
    %v1215 = vsub.s32 %v1212, %v1214
    %v1216 = vrot.slane %v1194, %v1215
    %v1218 = vunpack.c.l.s4 1966171168
    %v1219 = vunpack.c.0.s8 %v1218
    %v1220 = vlaneseq
    %v1221 = vshrl.u32 %v1220, 7
    %v1222 = vsub.s32 %v1219, %v1221
    %v1223 = vrot.slane %v1195, %v1222
    %v1224 = vcombine.high %v1202, %v1202
    %v1225 = vcombine.high %v1209, %v1209
    %v1226 = vcombine.high %v1216, %v1216
    %v1227 = vcombine.high %v1223, %v1223
    %v1228 = vcombine.high %v425, %v425
    %v1230 = vunpack.c.l.s4 1966171168
    %v1231 = vunpack.c.0.s8 %v1230
    %v1232 = vlaneseq
    %v1233 = vshrl.u32 %v1232, 7
    %v1234 = vsub.s32 %v1231, %v1233
    %v1235 = vrot.slane %v425, %v1234
    %v1237 = vunpack.c.l.s4 1966171168
    %v1238 = vunpack.c.0.s8 %v1237
    %v1239 = vlaneseq
    %v1240 = vshrl.u32 %v1239, 7
    %v1241 = vsub.s32 %v1238, %v1240
    %v1242 = vrot.slane %v1228, %v1241
    %v1243 = vcombine.high %v1235, %v1235
    %v1244 = vcombine.high %v1242, %v1242
    %v1246 = vunpack.c.l.s4 1966171168
    %v1247 = vunpack.c.0.s8 %v1246
    %v1248 = vlaneseq
    %v1249 = vshrl.u32 %v1248, 7
    %v1250 = vsub.s32 %v1247, %v1249
    %v1251 = vrot.slane %v1235, %v1250
    %v1253 = vunpack.c.l.s4 1966171168
    %v1254 = vunpack.c.0.s8 %v1253
    %v1255 = vlaneseq
    %v1256 = vshrl.u32 %v1255, 7
    %v1257 = vsub.s32 %v1254, %v1256
    %v1258 = vrot.slane %v1242, %v1257
    %v1260 = vunpack.c.l.s4 1966171168
    %v1261 = vunpack.c.0.s8 %v1260
    %v1262 = vlaneseq
    %v1263 = vshrl.u32 %v1262, 7
    %v1264 = vsub.s32 %v1261, %v1263
    %v1265 = vrot.slane %v1243, %v1264
    %v1267 = vunpack.c.l.s4 1966171168
    %v1268 = vunpack.c.0.s8 %v1267
    %v1269 = vlaneseq
    %v1270 = vshrl.u32 %v1269, 7
    %v1271 = vsub.s32 %v1268, %v1270
    %v1272 = vrot.slane %v1244, %v1271
    %v1273 = vcombine.high %v1251, %v1251
    %v1274 = vcombine.high %v1258, %v1258
    %v1275 = vcombine.high %v1265, %v1265
    %v1276 = vcombine.high %v1272, %v1272
    %v1277 = vcombine.high %v430, %v430
    %v1279 = vunpack.c.l.s4 1966171168
    %v1280 = vunpack.c.0.s8 %v1279
    %v1281 = vlaneseq
    %v1282 = vshrl.u32 %v1281, 7
    %v1283 = vsub.s32 %v1280, %v1282
    %v1284 = vrot.slane %v430, %v1283
    %v1286 = vunpack.c.l.s4 1966171168
    %v1287 = vunpack.c.0.s8 %v1286
    %v1288 = vlaneseq
    %v1289 = vshrl.u32 %v1288, 7
    %v1290 = vsub.s32 %v1287, %v1289
    %v1291 = vrot.slane %v1277, %v1290
    %v1292 = vcombine.high %v1284, %v1284
    %v1293 = vcombine.high %v1291, %v1291
    %v1295 = vunpack.c.l.s4 1966171168
    %v1296 = vunpack.c.0.s8 %v1295
    %v1297 = vlaneseq
    %v1298 = vshrl.u32 %v1297, 7
    %v1299 = vsub.s32 %v1296, %v1298
    %v1300 = vrot.slane %v1284, %v1299
    %v1302 = vunpack.c.l.s4 1966171168
    %v1303 = vunpack.c.0.s8 %v1302
    %v1304 = vlaneseq
    %v1305 = vshrl.u32 %v1304, 7
    %v1306 = vsub.s32 %v1303, %v1305
    %v1307 = vrot.slane %v1291, %v1306
    %v1309 = vunpack.c.l.s4 1966171168
    %v1310 = vunpack.c.0.s8 %v1309
    %v1311 = vlaneseq
    %v1312 = vshrl.u32 %v1311, 7
    %v1313 = vsub.s32 %v1310, %v1312
    %v1314 = vrot.slane %v1292, %v1313
    %v1316 = vunpack.c.l.s4 1966171168
    %v1317 = vunpack.c.0.s8 %v1316
    %v1318 = vlaneseq
    %v1319 = vshrl.u32 %v1318, 7
    %v1320 = vsub.s32 %v1317, %v1319
    %v1321 = vrot.slane %v1293, %v1320
    %v1322 = vcombine.high %v1300, %v1300
    %v1323 = vcombine.high %v1307, %v1307
    %v1324 = vcombine.high %v1314, %v1314
    %v1325 = vcombine.high %v1321, %v1321
    %v1326 = vcombine.high %v435, %v435
    %v1328 = vunpack.c.l.s4 1966171168
    %v1329 = vunpack.c.0.s8 %v1328
    %v1330 = vlaneseq
    %v1331 = vshrl.u32 %v1330, 7
    %v1332 = vsub.s32 %v1329, %v1331
    %v1333 = vrot.slane %v435, %v1332
    %v1335 = vunpack.c.l.s4 1966171168
    %v1336 = vunpack.c.0.s8 %v1335
    %v1337 = vlaneseq
    %v1338 = vshrl.u32 %v1337, 7
    %v1339 = vsub.s32 %v1336, %v1338
    %v1340 = vrot.slane %v1326, %v1339
    %v1341 = vcombine.high %v1333, %v1333
    %v1342 = vcombine.high %v1340, %v1340
    %v1344 = vunpack.c.l.s4 1966171168
    %v1345 = vunpack.c.0.s8 %v1344
    %v1346 = vlaneseq
    %v1347 = vshrl.u32 %v1346, 7
    %v1348 = vsub.s32 %v1345, %v1347
    %v1349 = vrot.slane %v1333, %v1348
    %v1351 = vunpack.c.l.s4 1966171168
    %v1352 = vunpack.c.0.s8 %v1351
    %v1353 = vlaneseq
    %v1354 = vshrl.u32 %v1353, 7
    %v1355 = vsub.s32 %v1352, %v1354
    %v1356 = vrot.slane %v1340, %v1355
    %v1358 = vunpack.c.l.s4 1966171168
    %v1359 = vunpack.c.0.s8 %v1358
    %v1360 = vlaneseq
    %v1361 = vshrl.u32 %v1360, 7
    %v1362 = vsub.s32 %v1359, %v1361
    %v1363 = vrot.slane %v1341, %v1362
    %v1365 = vunpack.c.l.s4 1966171168
    %v1366 = vunpack.c.0.s8 %v1365
    %v1367 = vlaneseq
    %v1368 = vshrl.u32 %v1367, 7
    %v1369 = vsub.s32 %v1366, %v1368
    %v1370 = vrot.slane %v1342, %v1369
    %v1371 = vcombine.high %v1349, %v1349
    %v1372 = vcombine.high %v1356, %v1356
    %v1373 = vcombine.high %v1363, %v1363
    %v1374 = vcombine.high %v1370, %v1370
    %v1375 = vlaneseq
    %v1376 = vshrl.u32 %v1375, 7
    %v1377 = vsub.s32 0, %v1376
    %v1378 = vrot.slane %v1006, %v1377
    %v1379 = vlaneseq
    %v1380 = vshrl.u32 %v1379, 7
    %v1381 = vsub.s32 0, %v1380
    %v1382 = vrot.slane %v1020, %v1381
    %v1383 = vlaneseq
    %v1384 = vshrl.u32 %v1383, 7
    %v1385 = vsub.s32 0, %v1384
    %v1386 = vrot.slane %v1028, %v1385
    %v1387 = vlaneseq
    %v1388 = vshrl.u32 %v1387, 7
    %v1389 = vsub.s32 0, %v1388
    %v1390 = vrot.slane %v1030, %v1389
    %v1391 = vlaneseq
    %v1392 = vshrl.u32 %v1391, 7
    %v1393 = vsub.s32 0, %v1392
    %v1394 = vrot.slane %v1013, %v1393
    %v1395 = vlaneseq
    %v1396 = vshrl.u32 %v1395, 7
    %v1397 = vsub.s32 0, %v1396
    %v1398 = vrot.slane %v1027, %v1397
    %v1399 = vlaneseq
    %v1400 = vshrl.u32 %v1399, 7
    %v1401 = vsub.s32 0, %v1400
    %v1402 = vrot.slane %v1029, %v1401
    %v1403 = vlaneseq
    %v1404 = vshrl.u32 %v1403, 7
    %v1405 = vsub.s32 0, %v1404
    %v1406 = vrot.slane %v1031, %v1405
    %v1407 = vlaneseq
    %v1408 = vshrl.u32 %v1407, 7
    %v1409 = vsub.s32 0, %v1408
    %v1410 = vrot.slane %v1055, %v1409
    %v1411 = vlaneseq
    %v1412 = vshrl.u32 %v1411, 7
    %v1413 = vsub.s32 0, %v1412
    %v1414 = vrot.slane %v1069, %v1413
    %v1415 = vlaneseq
    %v1416 = vshrl.u32 %v1415, 7
    %v1417 = vsub.s32 0, %v1416
    %v1418 = vrot.slane %v1077, %v1417
    %v1419 = vlaneseq
    %v1420 = vshrl.u32 %v1419, 7
    %v1421 = vsub.s32 0, %v1420
    %v1422 = vrot.slane %v1079, %v1421
    %v1423 = vlaneseq
    %v1424 = vshrl.u32 %v1423, 7
    %v1425 = vsub.s32 0, %v1424
    %v1426 = vrot.slane %v1062, %v1425
    %v1427 = vlaneseq
    %v1428 = vshrl.u32 %v1427, 7
    %v1429 = vsub.s32 0, %v1428
    %v1430 = vrot.slane %v1076, %v1429
    %v1431 = vlaneseq
    %v1432 = vshrl.u32 %v1431, 7
    %v1433 = vsub.s32 0, %v1432
    %v1434 = vrot.slane %v1078, %v1433
    %v1435 = vlaneseq
    %v1436 = vshrl.u32 %v1435, 7
    %v1437 = vsub.s32 0, %v1436
    %v1438 = vrot.slane %v1080, %v1437
    %v1439 = vlaneseq
    %v1440 = vshrl.u32 %v1439, 7
    %v1441 = vsub.s32 0, %v1440
    %v1442 = vrot.slane %v1104, %v1441
    %v1443 = vlaneseq
    %v1444 = vshrl.u32 %v1443, 7
    %v1445 = vsub.s32 0, %v1444
    %v1446 = vrot.slane %v1118, %v1445
    %v1447 = vlaneseq
    %v1448 = vshrl.u32 %v1447, 7
    %v1449 = vsub.s32 0, %v1448
    %v1450 = vrot.slane %v1126, %v1449
    %v1451 = vlaneseq
    %v1452 = vshrl.u32 %v1451, 7
    %v1453 = vsub.s32 0, %v1452
    %v1454 = vrot.slane %v1128, %v1453
    %v1455 = vlaneseq
    %v1456 = vshrl.u32 %v1455, 7
    %v1457 = vsub.s32 0, %v1456
    %v1458 = vrot.slane %v1111, %v1457
    %v1459 = vlaneseq
    %v1460 = vshrl.u32 %v1459, 7
    %v1461 = vsub.s32 0, %v1460
    %v1462 = vrot.slane %v1125, %v1461
    %v1463 = vlaneseq
    %v1464 = vshrl.u32 %v1463, 7
    %v1465 = vsub.s32 0, %v1464
    %v1466 = vrot.slane %v1127, %v1465
    %v1467 = vlaneseq
    %v1468 = vshrl.u32 %v1467, 7
    %v1469 = vsub.s32 0, %v1468
    %v1470 = vrot.slane %v1129, %v1469
    %v1471 = vlaneseq
    %v1472 = vshrl.u32 %v1471, 7
    %v1473 = vsub.s32 0, %v1472
    %v1474 = vrot.slane %v1153, %v1473
    %v1475 = vlaneseq
    %v1476 = vshrl.u32 %v1475, 7
    %v1477 = vsub.s32 0, %v1476
    %v1478 = vrot.slane %v1167, %v1477
    %v1479 = vlaneseq
    %v1480 = vshrl.u32 %v1479, 7
    %v1481 = vsub.s32 0, %v1480
    %v1482 = vrot.slane %v1175, %v1481
    %v1483 = vlaneseq
    %v1484 = vshrl.u32 %v1483, 7
    %v1485 = vsub.s32 0, %v1484
    %v1486 = vrot.slane %v1177, %v1485
    %v1487 = vlaneseq
    %v1488 = vshrl.u32 %v1487, 7
    %v1489 = vsub.s32 0, %v1488
    %v1490 = vrot.slane %v1160, %v1489
    %v1491 = vlaneseq
    %v1492 = vshrl.u32 %v1491, 7
    %v1493 = vsub.s32 0, %v1492
    %v1494 = vrot.slane %v1174, %v1493
    %v1495 = vlaneseq
    %v1496 = vshrl.u32 %v1495, 7
    %v1497 = vsub.s32 0, %v1496
    %v1498 = vrot.slane %v1176, %v1497
    %v1499 = vlaneseq
    %v1500 = vshrl.u32 %v1499, 7
    %v1501 = vsub.s32 0, %v1500
    %v1502 = vrot.slane %v1178, %v1501
    %v1503 = vlaneseq
    %v1504 = vshrl.u32 %v1503, 7
    %v1505 = vsub.s32 0, %v1504
    %v1506 = vrot.slane %v1202, %v1505
    %v1507 = vlaneseq
    %v1508 = vshrl.u32 %v1507, 7
    %v1509 = vsub.s32 0, %v1508
    %v1510 = vrot.slane %v1216, %v1509
    %v1511 = vlaneseq
    %v1512 = vshrl.u32 %v1511, 7
    %v1513 = vsub.s32 0, %v1512
    %v1514 = vrot.slane %v1224, %v1513
    %v1515 = vlaneseq
    %v1516 = vshrl.u32 %v1515, 7
    %v1517 = vsub.s32 0, %v1516
    %v1518 = vrot.slane %v1226, %v1517
    %v1519 = vlaneseq
    %v1520 = vshrl.u32 %v1519, 7
    %v1521 = vsub.s32 0, %v1520
    %v1522 = vrot.slane %v1209, %v1521
    %v1523 = vlaneseq
    %v1524 = vshrl.u32 %v1523, 7
    %v1525 = vsub.s32 0, %v1524
    %v1526 = vrot.slane %v1223, %v1525
    %v1527 = vlaneseq
    %v1528 = vshrl.u32 %v1527, 7
    %v1529 = vsub.s32 0, %v1528
    %v1530 = vrot.slane %v1225, %v1529
    %v1531 = vlaneseq
    %v1532 = vshrl.u32 %v1531, 7
    %v1533 = vsub.s32 0, %v1532
    %v1534 = vrot.slane %v1227, %v1533
    %v1535 = vlaneseq
    %v1536 = vshrl.u32 %v1535, 7
    %v1537 = vsub.s32 0, %v1536
    %v1538 = vrot.slane %v1251, %v1537
    %v1539 = vlaneseq
    %v1540 = vshrl.u32 %v1539, 7
    %v1541 = vsub.s32 0, %v1540
    %v1542 = vrot.slane %v1265, %v1541
    %v1543 = vlaneseq
    %v1544 = vshrl.u32 %v1543, 7
    %v1545 = vsub.s32 0, %v1544
    %v1546 = vrot.slane %v1273, %v1545
    %v1547 = vlaneseq
    %v1548 = vshrl.u32 %v1547, 7
    %v1549 = vsub.s32 0, %v1548
    %v1550 = vrot.slane %v1275, %v1549
    %v1551 = vlaneseq
    %v1552 = vshrl.u32 %v1551, 7
    %v1553 = vsub.s32 0, %v1552
    %v1554 = vrot.slane %v1258, %v1553
    %v1555 = vlaneseq
    %v1556 = vshrl.u32 %v1555, 7
    %v1557 = vsub.s32 0, %v1556
    %v1558 = vrot.slane %v1272, %v1557
    %v1559 = vlaneseq
    %v1560 = vshrl.u32 %v1559, 7
    %v1561 = vsub.s32 0, %v1560
    %v1562 = vrot.slane %v1274, %v1561
    %v1563 = vlaneseq
    %v1564 = vshrl.u32 %v1563, 7
    %v1565 = vsub.s32 0, %v1564
    %v1566 = vrot.slane %v1276, %v1565
    %v1567 = vlaneseq
    %v1568 = vshrl.u32 %v1567, 7
    %v1569 = vsub.s32 0, %v1568
    %v1570 = vrot.slane %v1300, %v1569
    %v1571 = vlaneseq
    %v1572 = vshrl.u32 %v1571, 7
    %v1573 = vsub.s32 0, %v1572
    %v1574 = vrot.slane %v1314, %v1573
    %v1575 = vlaneseq
    %v1576 = vshrl.u32 %v1575, 7
    %v1577 = vsub.s32 0, %v1576
    %v1578 = vrot.slane %v1322, %v1577
    %v1579 = vlaneseq
    %v1580 = vshrl.u32 %v1579, 7
    %v1581 = vsub.s32 0, %v1580
    %v1582 = vrot.slane %v1324, %v1581
    %v1583 = vlaneseq
    %v1584 = vshrl.u32 %v1583, 7
    %v1585 = vsub.s32 0, %v1584
    %v1586 = vrot.slane %v1307, %v1585
    %v1587 = vlaneseq
    %v1588 = vshrl.u32 %v1587, 7
    %v1589 = vsub.s32 0, %v1588
    %v1590 = vrot.slane %v1321, %v1589
    %v1591 = vlaneseq
    %v1592 = vshrl.u32 %v1591, 7
    %v1593 = vsub.s32 0, %v1592
    %v1594 = vrot.slane %v1323, %v1593
    %v1595 = vlaneseq
    %v1596 = vshrl.u32 %v1595, 7
    %v1597 = vsub.s32 0, %v1596
    %v1598 = vrot.slane %v1325, %v1597
    %v1599 = vlaneseq
    %v1600 = vshrl.u32 %v1599, 7
    %v1601 = vsub.s32 0, %v1600
    %v1602 = vrot.slane %v1349, %v1601
    %v1603 = vlaneseq
    %v1604 = vshrl.u32 %v1603, 7
    %v1605 = vsub.s32 0, %v1604
    %v1606 = vrot.slane %v1363, %v1605
    %v1607 = vlaneseq
    %v1608 = vshrl.u32 %v1607, 7
    %v1609 = vsub.s32 0, %v1608
    %v1610 = vrot.slane %v1371, %v1609
    %v1611 = vlaneseq
    %v1612 = vshrl.u32 %v1611, 7
    %v1613 = vsub.s32 0, %v1612
    %v1614 = vrot.slane %v1373, %v1613
    %v1615 = vlaneseq
    %v1616 = vshrl.u32 %v1615, 7
    %v1617 = vsub.s32 0, %v1616
    %v1618 = vrot.slane %v1356, %v1617
    %v1619 = vlaneseq
    %v1620 = vshrl.u32 %v1619, 7
    %v1621 = vsub.s32 0, %v1620
    %v1622 = vrot.slane %v1370, %v1621
    %v1623 = vlaneseq
    %v1624 = vshrl.u32 %v1623, 7
    %v1625 = vsub.s32 0, %v1624
    %v1626 = vrot.slane %v1372, %v1625
    %v1627 = vlaneseq
    %v1628 = vshrl.u32 %v1627, 7
    %v1629 = vsub.s32 0, %v1628
    %v1630 = vrot.slane %v1374, %v1629
    %v1695 = vmul.f32 %v533, %v1378
    %v1696 = vmul.f32 %v540, %v1382
    %v1697 = vmul.f32 %v547, %v1386
    %v1698 = vmul.f32 %v554, %v1390
    %v1699 = vmul.f32 %v561, %v1394
    %v1700 = vmul.f32 %v568, %v1398
    %v1701 = vmul.f32 %v575, %v1402
    %v1702 = vmul.f32 %v582, %v1406
    %v1703 = vmul.f32 %v589, %v1410
    %v1704 = vmul.f32 %v596, %v1414
    %v1705 = vmul.f32 %v603, %v1418
    %v1706 = vmul.f32 %v610, %v1422
    %v1707 = vmul.f32 %v617, %v1426
    %v1708 = vmul.f32 %v624, %v1430
    %v1709 = vmul.f32 %v631, %v1434
    %v1710 = vmul.f32 %v638, %v1438
    %v1711 = vmul.f32 %v645, %v1442
    %v1712 = vmul.f32 %v652, %v1446
    %v1713 = vmul.f32 %v659, %v1450
    %v1714 = vmul.f32 %v666, %v1454
    %v1715 = vmul.f32 %v673, %v1458
    %v1716 = vmul.f32 %v680, %v1462
    %v1717 = vmul.f32 %v687, %v1466
    %v1718 = vmul.f32 %v694, %v1470
    %v1719 = vmul.f32 %v701, %v1474
    %v1720 = vmul.f32 %v708, %v1478
    %v1721 = vmul.f32 %v715, %v1482
    %v1722 = vmul.f32 %v722, %v1486
    %v1723 = vmul.f32 %v729, %v1490
    %v1724 = vmul.f32 %v736, %v1494
    %v1725 = vmul.f32 %v743, %v1498
    %v1726 = vmul.f32 %v750, %v1502
    %v1727 = vmul.f32 %v757, %v1506
    %v1728 = vmul.f32 %v764, %v1510
    %v1729 = vmul.f32 %v771, %v1514
    %v1730 = vmul.f32 %v778, %v1518
    %v1731 = vmul.f32 %v785, %v1522
    %v1732 = vmul.f32 %v792, %v1526
    %v1733 = vmul.f32 %v799, %v1530
    %v1734 = vmul.f32 %v806, %v1534
    %v1735 = vmul.f32 %v813, %v1538
    %v1736 = vmul.f32 %v820, %v1542
    %v1737 = vmul.f32 %v827, %v1546
    %v1738 = vmul.f32 %v834, %v1550
    %v1739 = vmul.f32 %v841, %v1554
    %v1740 = vmul.f32 %v848, %v1558
    %v1741 = vmul.f32 %v855, %v1562
    %v1742 = vmul.f32 %v862, %v1566
    %v1743 = vmul.f32 %v869, %v1570
    %v1744 = vmul.f32 %v876, %v1574
    %v1745 = vmul.f32 %v883, %v1578
    %v1746 = vmul.f32 %v890, %v1582
    %v1747 = vmul.f32 %v897, %v1586
    %v1748 = vmul.f32 %v904, %v1590
    %v1749 = vmul.f32 %v911, %v1594
    %v1750 = vmul.f32 %v918, %v1598
    %v1751 = vmul.f32 %v925, %v1602
    %v1752 = vmul.f32 %v932, %v1606
    %v1753 = vmul.f32 %v939, %v1610
    %v1754 = vmul.f32 %v946, %v1614
    %v1755 = vmul.f32 %v953, %v1618
    %v1756 = vmul.f32 %v960, %v1622
    %v1757 = vmul.f32 %v967, %v1626
    %v1758 = vmul.f32 %v974, %v1630
    %v1759 = vcombine.low %v1695, %v1697
    %v1761 = vunpack.c.l.s4 1983009808
    %v1762 = vunpack.c.0.s8 %v1761
    %v1763 = vlaneseq
    %v1764 = vshrl.u32 %v1763, 7
    %v1765 = vsub.s32 %v1762, %v1764
    %v1766 = vrot.slane %v1759, %v1765
    %v1767 = vcombine.low %v1696, %v1698
    %v1769 = vunpack.c.l.s4 1983009808
    %v1770 = vunpack.c.0.s8 %v1769
    %v1771 = vlaneseq
    %v1772 = vshrl.u32 %v1771, 7
    %v1773 = vsub.s32 %v1770, %v1772
    %v1774 = vrot.slane %v1767, %v1773
    %v1775 = vcombine.low %v1699, %v1701
    %v1777 = vunpack.c.l.s4 1983009808
    %v1778 = vunpack.c.0.s8 %v1777
    %v1779 = vlaneseq
    %v1780 = vshrl.u32 %v1779, 7
    %v1781 = vsub.s32 %v1778, %v1780
    %v1782 = vrot.slane %v1775, %v1781
    %v1783 = vcombine.low %v1700, %v1702
    %v1785 = vunpack.c.l.s4 1983009808
    %v1786 = vunpack.c.0.s8 %v1785
    %v1787 = vlaneseq
    %v1788 = vshrl.u32 %v1787, 7
    %v1789 = vsub.s32 %v1786, %v1788
    %v1790 = vrot.slane %v1783, %v1789
    %v1791 = vcombine.low %v1766, %v1774
    %v1792 = vcombine.high %v1766, %v1774
    %v1794 = vunpack.c.l.s4 1934713408
    %v1795 = vunpack.c.0.s8 %v1794
    %v1796 = vlaneseq
    %v1797 = vshrl.u32 %v1796, 7
    %v1798 = vsub.s32 %v1795, %v1797
    %v1799 = vrot.slane %v1791, %v1798
    %v1801 = vunpack.c.l.s4 1934713408
    %v1802 = vunpack.c.0.s8 %v1801
    %v1803 = vlaneseq
    %v1804 = vshrl.u32 %v1803, 7
    %v1805 = vsub.s32 %v1802, %v1804
    %v1806 = vrot.slane %v1792, %v1805
    %v1807 = vcombine.low %v1782, %v1790
    %v1808 = vcombine.high %v1782, %v1790
    %v1810 = vunpack.c.l.s4 1934713408
    %v1811 = vunpack.c.0.s8 %v1810
    %v1812 = vlaneseq
    %v1813 = vshrl.u32 %v1812, 7
    %v1814 = vsub.s32 %v1811, %v1813
    %v1815 = vrot.slane %v1807, %v1814
    %v1817 = vunpack.c.l.s4 1934713408
    %v1818 = vunpack.c.0.s8 %v1817
    %v1819 = vlaneseq
    %v1820 = vshrl.u32 %v1819, 7
    %v1821 = vsub.s32 %v1818, %v1820
    %v1822 = vrot.slane %v1808, %v1821
    %v1823 = vcombine.low %v1799, %v1815
    %v1824 = vcombine.high %v1799, %v1815
    %v1825 = vcombine.low %v1806, %v1822
    %v1826 = vcombine.high %v1806, %v1822
    %v1827 = vcombine.low %v1703, %v1705
    %v1829 = vunpack.c.l.s4 1983009808
    %v1830 = vunpack.c.0.s8 %v1829
    %v1831 = vlaneseq
    %v1832 = vshrl.u32 %v1831, 7
    %v1833 = vsub.s32 %v1830, %v1832
    %v1834 = vrot.slane %v1827, %v1833
    %v1835 = vcombine.low %v1704, %v1706
    %v1837 = vunpack.c.l.s4 1983009808
    %v1838 = vunpack.c.0.s8 %v1837
    %v1839 = vlaneseq
    %v1840 = vshrl.u32 %v1839, 7
    %v1841 = vsub.s32 %v1838, %v1840
    %v1842 = vrot.slane %v1835, %v1841
    %v1843 = vcombine.low %v1707, %v1709
    %v1845 = vunpack.c.l.s4 1983009808
    %v1846 = vunpack.c.0.s8 %v1845
    %v1847 = vlaneseq
    %v1848 = vshrl.u32 %v1847, 7
    %v1849 = vsub.s32 %v1846, %v1848
    %v1850 = vrot.slane %v1843, %v1849
    %v1851 = vcombine.low %v1708, %v1710
    %v1853 = vunpack.c.l.s4 1983009808
    %v1854 = vunpack.c.0.s8 %v1853
    %v1855 = vlaneseq
    %v1856 = vshrl.u32 %v1855, 7
    %v1857 = vsub.s32 %v1854, %v1856
    %v1858 = vrot.slane %v1851, %v1857
    %v1859 = vcombine.low %v1834, %v1842
    %v1860 = vcombine.high %v1834, %v1842
    %v1862 = vunpack.c.l.s4 1934713408
    %v1863 = vunpack.c.0.s8 %v1862
    %v1864 = vlaneseq
    %v1865 = vshrl.u32 %v1864, 7
    %v1866 = vsub.s32 %v1863, %v1865
    %v1867 = vrot.slane %v1859, %v1866
    %v1869 = vunpack.c.l.s4 1934713408
    %v1870 = vunpack.c.0.s8 %v1869
    %v1871 = vlaneseq
    %v1872 = vshrl.u32 %v1871, 7
    %v1873 = vsub.s32 %v1870, %v1872
    %v1874 = vrot.slane %v1860, %v1873
    %v1875 = vcombine.low %v1850, %v1858
    %v1876 = vcombine.high %v1850, %v1858
    %v1878 = vunpack.c.l.s4 1934713408
    %v1879 = vunpack.c.0.s8 %v1878
    %v1880 = vlaneseq
    %v1881 = vshrl.u32 %v1880, 7
    %v1882 = vsub.s32 %v1879, %v1881
    %v1883 = vrot.slane %v1875, %v1882
    %v1885 = vunpack.c.l.s4 1934713408
    %v1886 = vunpack.c.0.s8 %v1885
    %v1887 = vlaneseq
    %v1888 = vshrl.u32 %v1887, 7
    %v1889 = vsub.s32 %v1886, %v1888
    %v1890 = vrot.slane %v1876, %v1889
    %v1891 = vcombine.low %v1867, %v1883
    %v1892 = vcombine.high %v1867, %v1883
    %v1893 = vcombine.low %v1874, %v1890
    %v1894 = vcombine.high %v1874, %v1890
    %v1895 = vcombine.low %v1711, %v1713
    %v1897 = vunpack.c.l.s4 1983009808
    %v1898 = vunpack.c.0.s8 %v1897
    %v1899 = vlaneseq
    %v1900 = vshrl.u32 %v1899, 7
    %v1901 = vsub.s32 %v1898, %v1900
    %v1902 = vrot.slane %v1895, %v1901
    %v1903 = vcombine.low %v1712, %v1714
    %v1905 = vunpack.c.l.s4 1983009808
    %v1906 = vunpack.c.0.s8 %v1905
    %v1907 = vlaneseq
    %v1908 = vshrl.u32 %v1907, 7
    %v1909 = vsub.s32 %v1906, %v1908
    %v1910 = vrot.slane %v1903, %v1909
    %v1911 = vcombine.low %v1715, %v1717
    %v1913 = vunpack.c.l.s4 1983009808
    %v1914 = vunpack.c.0.s8 %v1913
    %v1915 = vlaneseq
    %v1916 = vshrl.u32 %v1915, 7
    %v1917 = vsub.s32 %v1914, %v1916
    %v1918 = vrot.slane %v1911, %v1917
    %v1919 = vcombine.low %v1716, %v1718
    %v1921 = vunpack.c.l.s4 1983009808
    %v1922 = vunpack.c.0.s8 %v1921
    %v1923 = vlaneseq
    %v1924 = vshrl.u32 %v1923, 7
    %v1925 = vsub.s32 %v1922, %v1924
    %v1926 = vrot.slane %v1919, %v1925
    %v1927 = vcombine.low %v1902, %v1910
    %v1928 = vcombine.high %v1902, %v1910
    %v1930 = vunpack.c.l.s4 1934713408
    %v1931 = vunpack.c.0.s8 %v1930
    %v1932 = vlaneseq
    %v1933 = vshrl.u32 %v1932, 7
    %v1934 = vsub.s32 %v1931, %v1933
    %v1935 = vrot.slane %v1927, %v1934
    %v1937 = vunpack.c.l.s4 1934713408
    %v1938 = vunpack.c.0.s8 %v1937
    %v1939 = vlaneseq
    %v1940 = vshrl.u32 %v1939, 7
    %v1941 = vsub.s32 %v1938, %v1940
    %v1942 = vrot.slane %v1928, %v1941
    %v1943 = vcombine.low %v1918, %v1926
    %v1944 = vcombine.high %v1918, %v1926
    %v1946 = vunpack.c.l.s4 1934713408
    %v1947 = vunpack.c.0.s8 %v1946
    %v1948 = vlaneseq
    %v1949 = vshrl.u32 %v1948, 7
    %v1950 = vsub.s32 %v1947, %v1949
    %v1951 = vrot.slane %v1943, %v1950
    %v1953 = vunpack.c.l.s4 1934713408
    %v1954 = vunpack.c.0.s8 %v1953
    %v1955 = vlaneseq
    %v1956 = vshrl.u32 %v1955, 7
    %v1957 = vsub.s32 %v1954, %v1956
    %v1958 = vrot.slane %v1944, %v1957
    %v1959 = vcombine.low %v1935, %v1951
    %v1960 = vcombine.high %v1935, %v1951
    %v1961 = vcombine.low %v1942, %v1958
    %v1962 = vcombine.high %v1942, %v1958
    %v1963 = vcombine.low %v1719, %v1721
    %v1965 = vunpack.c.l.s4 1983009808
    %v1966 = vunpack.c.0.s8 %v1965
    %v1967 = vlaneseq
    %v1968 = vshrl.u32 %v1967, 7
    %v1969 = vsub.s32 %v1966, %v1968
    %v1970 = vrot.slane %v1963, %v1969
    %v1971 = vcombine.low %v1720, %v1722
    %v1973 = vunpack.c.l.s4 1983009808
    %v1974 = vunpack.c.0.s8 %v1973
    %v1975 = vlaneseq
    %v1976 = vshrl.u32 %v1975, 7
    %v1977 = vsub.s32 %v1974, %v1976
    %v1978 = vrot.slane %v1971, %v1977
    %v1979 = vcombine.low %v1723, %v1725
    %v1981 = vunpack.c.l.s4 1983009808
    %v1982 = vunpack.c.0.s8 %v1981
    %v1983 = vlaneseq
    %v1984 = vshrl.u32 %v1983, 7
    %v1985 = vsub.s32 %v1982, %v1984
    %v1986 = vrot.slane %v1979, %v1985
    %v1987 = vcombine.low %v1724, %v1726
    %v1989 = vunpack.c.l.s4 1983009808
    %v1990 = vunpack.c.0.s8 %v1989
    %v1991 = vlaneseq
    %v1992 = vshrl.u32 %v1991, 7
    %v1993 = vsub.s32 %v1990, %v1992
    %v1994 = vrot.slane %v1987, %v1993
    %v1995 = vcombine.low %v1970, %v1978
    %v1996 = vcombine.high %v1970, %v1978
    %v1998 = vunpack.c.l.s4 1934713408
    %v1999 = vunpack.c.0.s8 %v1998
    %v2000 = vlaneseq
    %v2001 = vshrl.u32 %v2000, 7
    %v2002 = vsub.s32 %v1999, %v2001
    %v2003 = vrot.slane %v1995, %v2002
    %v2005 = vunpack.c.l.s4 1934713408
    %v2006 = vunpack.c.0.s8 %v2005
    %v2007 = vlaneseq
    %v2008 = vshrl.u32 %v2007, 7
    %v2009 = vsub.s32 %v2006, %v2008
    %v2010 = vrot.slane %v1996, %v2009
    %v2011 = vcombine.low %v1986, %v1994
    %v2012 = vcombine.high %v1986, %v1994
    %v2014 = vunpack.c.l.s4 1934713408
    %v2015 = vunpack.c.0.s8 %v2014
    %v2016 = vlaneseq
    %v2017 = vshrl.u32 %v2016, 7
    %v2018 = vsub.s32 %v2015, %v2017
    %v2019 = vrot.slane %v2011, %v2018
    %v2021 = vunpack.c.l.s4 1934713408
    %v2022 = vunpack.c.0.s8 %v2021
    %v2023 = vlaneseq
    %v2024 = vshrl.u32 %v2023, 7
    %v2025 = vsub.s32 %v2022, %v2024
    %v2026 = vrot.slane %v2012, %v2025
    %v2027 = vcombine.low %v2003, %v2019
    %v2028 = vcombine.high %v2003, %v2019
    %v2029 = vcombine.low %v2010, %v2026
    %v2030 = vcombine.high %v2010, %v2026
    %v2031 = vcombine.low %v1727, %v1729
    %v2033 = vunpack.c.l.s4 1983009808
    %v2034 = vunpack.c.0.s8 %v2033
    %v2035 = vlaneseq
    %v2036 = vshrl.u32 %v2035, 7
    %v2037 = vsub.s32 %v2034, %v2036
    %v2038 = vrot.slane %v2031, %v2037
    %v2039 = vcombine.low %v1728, %v1730
    %v2041 = vunpack.c.l.s4 1983009808
    %v2042 = vunpack.c.0.s8 %v2041
    %v2043 = vlaneseq
    %v2044 = vshrl.u32 %v2043, 7
    %v2045 = vsub.s32 %v2042, %v2044
    %v2046 = vrot.slane %v2039, %v2045
    %v2047 = vcombine.low %v1731, %v1733
    %v2049 = vunpack.c.l.s4 1983009808
    %v2050 = vunpack.c.0.s8 %v2049
    %v2051 = vlaneseq
    %v2052 = vshrl.u32 %v2051, 7
    %v2053 = vsub.s32 %v2050, %v2052
    %v2054 = vrot.slane %v2047, %v2053
    %v2055 = vcombine.low %v1732, %v1734
    %v2057 = vunpack.c.l.s4 1983009808
    %v2058 = vunpack.c.0.s8 %v2057
    %v2059 = vlaneseq
    %v2060 = vshrl.u32 %v2059, 7
    %v2061 = vsub.s32 %v2058, %v2060
    %v2062 = vrot.slane %v2055, %v2061
    %v2063 = vcombine.low %v2038, %v2046
    %v2064 = vcombine.high %v2038, %v2046
    %v2066 = vunpack.c.l.s4 1934713408
    %v2067 = vunpack.c.0.s8 %v2066
    %v2068 = vlaneseq
    %v2069 = vshrl.u32 %v2068, 7
    %v2070 = vsub.s32 %v2067, %v2069
    %v2071 = vrot.slane %v2063, %v2070
    %v2073 = vunpack.c.l.s4 1934713408
    %v2074 = vunpack.c.0.s8 %v2073
    %v2075 = vlaneseq
    %v2076 = vshrl.u32 %v2075, 7
    %v2077 = vsub.s32 %v2074, %v2076
    %v2078 = vrot.slane %v2064, %v2077
    %v2079 = vcombine.low %v2054, %v2062
    %v2080 = vcombine.high %v2054, %v2062
    %v2082 = vunpack.c.l.s4 1934713408
    %v2083 = vunpack.c.0.s8 %v2082
    %v2084 = vlaneseq
    %v2085 = vshrl.u32 %v2084, 7
    %v2086 = vsub.s32 %v2083, %v2085
    %v2087 = vrot.slane %v2079, %v2086
    %v2089 = vunpack.c.l.s4 1934713408
    %v2090 = vunpack.c.0.s8 %v2089
    %v2091 = vlaneseq
    %v2092 = vshrl.u32 %v2091, 7
    %v2093 = vsub.s32 %v2090, %v2092
    %v2094 = vrot.slane %v2080, %v2093
    %v2095 = vcombine.low %v2071, %v2087
    %v2096 = vcombine.high %v2071, %v2087
    %v2097 = vcombine.low %v2078, %v2094
    %v2098 = vcombine.high %v2078, %v2094
    %v2099 = vcombine.low %v1735, %v1737
    %v2101 = vunpack.c.l.s4 1983009808
    %v2102 = vunpack.c.0.s8 %v2101
    %v2103 = vlaneseq
    %v2104 = vshrl.u32 %v2103, 7
    %v2105 = vsub.s32 %v2102, %v2104
    %v2106 = vrot.slane %v2099, %v2105
    %v2107 = vcombine.low %v1736, %v1738
    %v2109 = vunpack.c.l.s4 1983009808
    %v2110 = vunpack.c.0.s8 %v2109
    %v2111 = vlaneseq
    %v2112 = vshrl.u32 %v2111, 7
    %v2113 = vsub.s32 %v2110, %v2112
    %v2114 = vrot.slane %v2107, %v2113
    %v2115 = vcombine.low %v1739, %v1741
    %v2117 = vunpack.c.l.s4 1983009808
    %v2118 = vunpack.c.0.s8 %v2117
    %v2119 = vlaneseq
    %v2120 = vshrl.u32 %v2119, 7
    %v2121 = vsub.s32 %v2118, %v2120
    %v2122 = vrot.slane %v2115, %v2121
    %v2123 = vcombine.low %v1740, %v1742
    %v2125 = vunpack.c.l.s4 1983009808
    %v2126 = vunpack.c.0.s8 %v2125
    %v2127 = vlaneseq
    %v2128 = vshrl.u32 %v2127, 7
    %v2129 = vsub.s32 %v2126, %v2128
    %v2130 = vrot.slane %v2123, %v2129
    %v2131 = vcombine.low %v2106, %v2114
    %v2132 = vcombine.high %v2106, %v2114
    %v2134 = vunpack.c.l.s4 1934713408
    %v2135 = vunpack.c.0.s8 %v2134
    %v2136 = vlaneseq
    %v2137 = vshrl.u32 %v2136, 7
    %v2138 = vsub.s32 %v2135, %v2137
    %v2139 = vrot.slane %v2131, %v2138
    %v2141 = vunpack.c.l.s4 1934713408
    %v2142 = vunpack.c.0.s8 %v2141
    %v2143 = vlaneseq
    %v2144 = vshrl.u32 %v2143, 7
    %v2145 = vsub.s32 %v2142, %v2144
    %v2146 = vrot.slane %v2132, %v2145
    %v2147 = vcombine.low %v2122, %v2130
    %v2148 = vcombine.high %v2122, %v2130
    %v2150 = vunpack.c.l.s4 1934713408
    %v2151 = vunpack.c.0.s8 %v2150
    %v2152 = vlaneseq
    %v2153 = vshrl.u32 %v2152, 7
    %v2154 = vsub.s32 %v2151, %v2153
    %v2155 = vrot.slane %v2147, %v2154
    %v2157 = vunpack.c.l.s4 1934713408
    %v2158 = vunpack.c.0.s8 %v2157
    %v2159 = vlaneseq
    %v2160 = vshrl.u32 %v2159, 7
    %v2161 = vsub.s32 %v2158, %v2160
    %v2162 = vrot.slane %v2148, %v2161
    %v2163 = vcombine.low %v2139, %v2155
    %v2164 = vcombine.high %v2139, %v2155
    %v2165 = vcombine.low %v2146, %v2162
    %v2166 = vcombine.high %v2146, %v2162
    %v2167 = vcombine.low %v1743, %v1745
    %v2169 = vunpack.c.l.s4 1983009808
    %v2170 = vunpack.c.0.s8 %v2169
    %v2171 = vlaneseq
    %v2172 = vshrl.u32 %v2171, 7
    %v2173 = vsub.s32 %v2170, %v2172
    %v2174 = vrot.slane %v2167, %v2173
    %v2175 = vcombine.low %v1744, %v1746
    %v2177 = vunpack.c.l.s4 1983009808
    %v2178 = vunpack.c.0.s8 %v2177
    %v2179 = vlaneseq
    %v2180 = vshrl.u32 %v2179, 7
    %v2181 = vsub.s32 %v2178, %v2180
    %v2182 = vrot.slane %v2175, %v2181
    %v2183 = vcombine.low %v1747, %v1749
    %v2185 = vunpack.c.l.s4 1983009808
    %v2186 = vunpack.c.0.s8 %v2185
    %v2187 = vlaneseq
    %v2188 = vshrl.u32 %v2187, 7
    %v2189 = vsub.s32 %v2186, %v2188
    %v2190 = vrot.slane %v2183, %v2189
    %v2191 = vcombine.low %v1748, %v1750
    %v2193 = vunpack.c.l.s4 1983009808
    %v2194 = vunpack.c.0.s8 %v2193
    %v2195 = vlaneseq
    %v2196 = vshrl.u32 %v2195, 7
    %v2197 = vsub.s32 %v2194, %v2196
    %v2198 = vrot.slane %v2191, %v2197
    %v2199 = vcombine.low %v2174, %v2182
    %v2200 = vcombine.high %v2174, %v2182
    %v2202 = vunpack.c.l.s4 1934713408
    %v2203 = vunpack.c.0.s8 %v2202
    %v2204 = vlaneseq
    %v2205 = vshrl.u32 %v2204, 7
    %v2206 = vsub.s32 %v2203, %v2205
    %v2207 = vrot.slane %v2199, %v2206
    %v2209 = vunpack.c.l.s4 1934713408
    %v2210 = vunpack.c.0.s8 %v2209
    %v2211 = vlaneseq
    %v2212 = vshrl.u32 %v2211, 7
    %v2213 = vsub.s32 %v2210, %v2212
    %v2214 = vrot.slane %v2200, %v2213
    %v2215 = vcombine.low %v2190, %v2198
    %v2216 = vcombine.high %v2190, %v2198
    %v2218 = vunpack.c.l.s4 1934713408
    %v2219 = vunpack.c.0.s8 %v2218
    %v2220 = vlaneseq
    %v2221 = vshrl.u32 %v2220, 7
    %v2222 = vsub.s32 %v2219, %v2221
    %v2223 = vrot.slane %v2215, %v2222
    %v2225 = vunpack.c.l.s4 1934713408
    %v2226 = vunpack.c.0.s8 %v2225
    %v2227 = vlaneseq
    %v2228 = vshrl.u32 %v2227, 7
    %v2229 = vsub.s32 %v2226, %v2228
    %v2230 = vrot.slane %v2216, %v2229
    %v2231 = vcombine.low %v2207, %v2223
    %v2232 = vcombine.high %v2207, %v2223
    %v2233 = vcombine.low %v2214, %v2230
    %v2234 = vcombine.high %v2214, %v2230
    %v2235 = vcombine.low %v1751, %v1753
    %v2237 = vunpack.c.l.s4 1983009808
    %v2238 = vunpack.c.0.s8 %v2237
    %v2239 = vlaneseq
    %v2240 = vshrl.u32 %v2239, 7
    %v2241 = vsub.s32 %v2238, %v2240
    %v2242 = vrot.slane %v2235, %v2241
    %v2243 = vcombine.low %v1752, %v1754
    %v2245 = vunpack.c.l.s4 1983009808
    %v2246 = vunpack.c.0.s8 %v2245
    %v2247 = vlaneseq
    %v2248 = vshrl.u32 %v2247, 7
    %v2249 = vsub.s32 %v2246, %v2248
    %v2250 = vrot.slane %v2243, %v2249
    %v2251 = vcombine.low %v1755, %v1757
    %v2253 = vunpack.c.l.s4 1983009808
    %v2254 = vunpack.c.0.s8 %v2253
    %v2255 = vlaneseq
    %v2256 = vshrl.u32 %v2255, 7
    %v2257 = vsub.s32 %v2254, %v2256
    %v2258 = vrot.slane %v2251, %v2257
    %v2259 = vcombine.low %v1756, %v1758
    %v2261 = vunpack.c.l.s4 1983009808
    %v2262 = vunpack.c.0.s8 %v2261
    %v2263 = vlaneseq
    %v2264 = vshrl.u32 %v2263, 7
    %v2265 = vsub.s32 %v2262, %v2264
    %v2266 = vrot.slane %v2259, %v2265
    %v2267 = vcombine.low %v2242, %v2250
    %v2268 = vcombine.high %v2242, %v2250
    %v2270 = vunpack.c.l.s4 1934713408
    %v2271 = vunpack.c.0.s8 %v2270
    %v2272 = vlaneseq
    %v2273 = vshrl.u32 %v2272, 7
    %v2274 = vsub.s32 %v2271, %v2273
    %v2275 = vrot.slane %v2267, %v2274
    %v2277 = vunpack.c.l.s4 1934713408
    %v2278 = vunpack.c.0.s8 %v2277
    %v2279 = vlaneseq
    %v2280 = vshrl.u32 %v2279, 7
    %v2281 = vsub.s32 %v2278, %v2280
    %v2282 = vrot.slane %v2268, %v2281
    %v2283 = vcombine.low %v2258, %v2266
    %v2284 = vcombine.high %v2258, %v2266
    %v2286 = vunpack.c.l.s4 1934713408
    %v2287 = vunpack.c.0.s8 %v2286
    %v2288 = vlaneseq
    %v2289 = vshrl.u32 %v2288, 7
    %v2290 = vsub.s32 %v2287, %v2289
    %v2291 = vrot.slane %v2283, %v2290
    %v2293 = vunpack.c.l.s4 1934713408
    %v2294 = vunpack.c.0.s8 %v2293
    %v2295 = vlaneseq
    %v2296 = vshrl.u32 %v2295, 7
    %v2297 = vsub.s32 %v2294, %v2296
    %v2298 = vrot.slane %v2284, %v2297
    %v2299 = vcombine.low %v2275, %v2291
    %v2300 = vcombine.high %v2275, %v2291
    %v2301 = vcombine.low %v2282, %v2298
    %v2302 = vcombine.high %v2282, %v2298
    %2311 = vrot.lane.b32.xlu0 %v1824, 16
    %v2312 = vpop.permute.xlu0 %2311
    %2313 = vrot.lane.b32.xlu0 %v1892, 16
    %v2314 = vpop.permute.xlu0 %2313
    %2315 = vrot.lane.b32.xlu0 %v1960, 16
    %v2316 = vpop.permute.xlu0 %2315
    %2317 = vrot.lane.b32.xlu0 %v2028, 16
    %v2318 = vpop.permute.xlu0 %2317
    %2319 = vrot.lane.b32.xlu0 %v2096, 16
    %v2320 = vpop.permute.xlu0 %2319
    %2321 = vrot.lane.b32.xlu0 %v2164, 16
    %v2322 = vpop.permute.xlu0 %2321
    %2323 = vrot.lane.b32.xlu0 %v2232, 16
    %v2324 = vpop.permute.xlu0 %2323
    %2325 = vrot.lane.b32.xlu0 %v2300, 16
    %v2326 = vpop.permute.xlu0 %2325
    %2343 = vrot.lane.b32.xlu0 %v1825, 32
    %v2344 = vpop.permute.xlu0 %2343
    %2345 = vrot.lane.b32.xlu0 %v1893, 32
    %v2346 = vpop.permute.xlu0 %2345
    %2347 = vrot.lane.b32.xlu0 %v1961, 32
    %v2348 = vpop.permute.xlu0 %2347
    %2349 = vrot.lane.b32.xlu0 %v2029, 32
    %v2350 = vpop.permute.xlu0 %2349
    %2351 = vrot.lane.b32.xlu0 %v2097, 32
    %v2352 = vpop.permute.xlu0 %2351
    %2353 = vrot.lane.b32.xlu0 %v2165, 32
    %v2354 = vpop.permute.xlu0 %2353
    %2355 = vrot.lane.b32.xlu0 %v2233, 32
    %v2356 = vpop.permute.xlu0 %2355
    %2357 = vrot.lane.b32.xlu0 %v2301, 32
    %v2358 = vpop.permute.xlu0 %2357
    %2375 = vrot.lane.b32.xlu0 %v1826, 48
    %v2376 = vpop.permute.xlu0 %2375
    %2377 = vrot.lane.b32.xlu0 %v1894, 48
    %v2378 = vpop.permute.xlu0 %2377
    %2379 = vrot.lane.b32.xlu0 %v1962, 48
    %v2380 = vpop.permute.xlu0 %2379
    %2381 = vrot.lane.b32.xlu0 %v2030, 48
    %v2382 = vpop.permute.xlu0 %2381
    %2383 = vrot.lane.b32.xlu0 %v2098, 48
    %v2384 = vpop.permute.xlu0 %2383
    %2385 = vrot.lane.b32.xlu0 %v2166, 48
    %v2386 = vpop.permute.xlu0 %2385
    %2387 = vrot.lane.b32.xlu0 %v2234, 48
    %v2388 = vpop.permute.xlu0 %2387
    %2389 = vrot.lane.b32.xlu0 %v2302, 48
    %v2390 = vpop.permute.xlu0 %2389
    %vm2399 = vcmask 130048
    %v2400 = vsel %vm2399, %v1823, %v2312
    %v2401 = vsel %vm2399, %v1891, %v2314
    %v2402 = vsel %vm2399, %v1959, %v2316
    %v2403 = vsel %vm2399, %v2027, %v2318
    %v2404 = vsel %vm2399, %v2095, %v2320
    %v2405 = vsel %vm2399, %v2163, %v2322
    %v2406 = vsel %vm2399, %v2231, %v2324
    %v2407 = vsel %vm2399, %v2299, %v2326
    %v2408 = vsel %vm192, %v2400, %v2344
    %v2409 = vsel %vm192, %v2401, %v2346
    %v2410 = vsel %vm192, %v2402, %v2348
    %v2411 = vsel %vm192, %v2403, %v2350
    %v2412 = vsel %vm192, %v2404, %v2352
    %v2413 = vsel %vm192, %v2405, %v2354
    %v2414 = vsel %vm192, %v2406, %v2356
    %v2415 = vsel %vm192, %v2407, %v2358
    %vm2416 = vcmask 392192
    %v2417 = vsel %vm2416, %v2408, %v2376
    %v2418 = vsel %vm2416, %v2409, %v2378
    %v2419 = vsel %vm2416, %v2410, %v2380
    %v2420 = vsel %vm2416, %v2411, %v2382
    %v2421 = vsel %vm2416, %v2412, %v2384
    %v2422 = vsel %vm2416, %v2413, %v2386
    %v2423 = vsel %vm2416, %v2414, %v2388
    %v2424 = vsel %vm2416, %v2415, %v2390
    %v2425 = vpack.c.bf16 %v2418, %v2417
    %v2426 = vpack.c.bf16 %v2420, %v2419
    %v2427 = vpack.c.bf16 %v2422, %v2421
    %v2428 = vpack.c.bf16 %v2424, %v2423
    %v2433 = vunpack.c.l.b16 %v2425
    %v2434 = vunpack.c.h.b16 %v2425
    %v2435 = vunpack.c.l.b16 %v2426
    %v2436 = vunpack.c.h.b16 %v2426
    %v2437 = vunpack.c.l.b16 %v2427
    %v2438 = vunpack.c.h.b16 %v2427
    %v2439 = vunpack.c.l.b16 %v2428
    %v2440 = vunpack.c.h.b16 %v2428
    %v2441 = vpack.c.b16 %v2433, %v2433
    %v2442 = vpack.c.b16 %v2434, %v2434
    %v2443 = vpack.c.b16 %v2435, %v2435
    %v2444 = vpack.c.b16 %v2436, %v2436
    %v2445 = vpack.c.b16 %v2437, %v2437
    %v2446 = vpack.c.b16 %v2438, %v2438
    %v2447 = vpack.c.b16 %v2439, %v2439
    %v2448 = vpack.c.b16 %v2440, %v2440
    %vm2457 = vcmask 519168
    %2458 = vst.msk [vmem:[#allocation2] sm:$0xf] %vm2457, %v2441
    %2459 = vst.msk [vmem:[#allocation2 + $0x4] sm:$0xf] %vm2457, %v2442
    %2460 = vst.msk [vmem:[#allocation2 + $0x8] sm:$0xf] %vm2457, %v2443
    %2461 = vst.msk [vmem:[#allocation2 + $0xc] sm:$0xf] %vm2457, %v2444
    %2462 = vst.msk [vmem:[#allocation2 + $0x10] sm:$0xf] %vm2457, %v2445
    %2463 = vst.msk [vmem:[#allocation2 + $0x14] sm:$0xf] %vm2457, %v2446
    %2464 = vst.msk [vmem:[#allocation2 + $0x18] sm:$0xf] %vm2457, %v2447
    %2465 = vst.msk [vmem:[#allocation2 + $0x1c] sm:$0xf] %vm2457, %v2448
    // Predicated region
    $region30: #{tpu_custom_call.1} parent=1 // pred_check
      _
    $region31: #{tpu_custom_call.1} parent=1 // pred_check_branch
      %2467 = sbr.rel (0) target = $region33
    $region32: #{tpu_custom_call.1} parent=1 // pred_region
      %s2469 = ssub.s32 512, 512
      %2470 = vsyncadd [#allocation3], %s2469
      %s2471 = sshll.u32 [#allocation2], 4
      %s2472 = int_to_ptr.vmem [resolvable:$true] %s2471
      %2477 = dma.vmem_to_hbm [thread:$0]  %s2472, 512, %s7, [#allocation3], 64, 64, 4
    $region33: #{tpu_custom_call.1} parent=1 // pred_fallthru
      _
    // Predicated region
    $region34: #{tpu_custom_call.1} parent=1 // pred_check
      _
    $region35: #{tpu_custom_call.1} parent=1 // pred_check_branch
      %2479 = sbr.rel (0) target = $region37
    $region36: #{tpu_custom_call.1} parent=1 // pred_region
      %2480 = dma.done [#allocation3], 512
    $region37: #{tpu_custom_call.1} parent=1 // pred_fallthru
      _
    %2481 = vsyncpa [#allocation3], 1

</llo_original>
